<compile_context>
chip_gen: v6e
topology: v6e:2x2x1
jax: 0.10.0
libtpu: 0.0.40
codegen_flags: <defaults>
</compile_context>

<pallas_src>
import jax
import jax.numpy as jnp
from jax.experimental import pallas as pl
from jax.experimental.pallas import tpu as pltpu


def _round_up(x, m):
    return (x + m - 1) // m * m


def _working_set_bytes(tm, th, V):
    """Conservative VMEM working-set estimate for one grid step (double-buffered)."""
    x_bytes = 2 * tm * V * 2                      # x tile (bf16), 2 buffers
    w_bytes = 2 * (2 * V * th + th * V) * 2       # W1, W2, W3 chunks (bf16), 2 buffers
    b_bytes = 2 * (2 * th + V) * 4                # b1, b2, b3 (f32), 2 buffers
    out_bytes = 2 * tm * V * 4                    # resident f32 output/accumulator tile
    return x_bytes + w_bytes + b_bytes + out_bytes


def _vmem_budget_bytes():
    """Per-generation VMEM budget for tile selection."""
    cap = None
    try:
        cap = getattr(pltpu.get_tpu_info(), "vmem_capacity_bytes", None)
    except Exception:
        cap = None
    if cap is None:
        return 44 << 20                 # unknown -> v7x-safe default
    if cap >= (100 << 20):
        return 96 << 20                 # v5e / v6e: 128 MiB physical per TC
    return 44 << 20                     # v7x: 64 MiB per TC


def gated_mlp_kernel(x_ref, w1_ref, b1_ref, w2_ref, b2_ref, w3_ref, b3_ref, o_ref):
    """Grid = (token_tiles, H_chunks).

    The H axis is the reduction of the second matmul.  The output block's index
    map is constant along h, so o_ref stays resident in VMEM and is used directly
    as the f32 accumulator; b3 is added once at the last H chunk.
    """
    h = pl.program_id(1)

    @pl.when(h == 0)
    def _init():
        o_ref[...] = jnp.zeros_like(o_ref)

    x = x_ref[...]                                                    # (tm, V) bf16
    h1 = jnp.dot(x, w1_ref[...], preferred_element_type=jnp.float32) + b1_ref[...]
    h2 = jnp.dot(x, w2_ref[...], preferred_element_type=jnp.float32) + b2_ref[...]
    gated = (h1 * (h2 * jax.nn.sigmoid(h2))).astype(jnp.bfloat16)     # mlp1(x) * SiLU(mlp2(x))
    o_ref[...] += jnp.dot(gated, w3_ref[...], preferred_element_type=jnp.float32)

    @pl.when(h == pl.num_programs(1) - 1)
    def _finalize():
        o_ref[...] += b3_ref[...]


def gated_mlp_forward(x, params, *, tm=None, th=None, vmem_budget_bytes=None):
    V = x.shape[-1]
    H = params["w1"].shape[-1]
    assert V % 128 == 0, "pad V to a multiple of 128 for lane-dense tiles"
    assert H % 128 == 0, "pad H to a multiple of 128 for lane-dense tiles"

    x2 = x.reshape(-1, V)
    T = x2.shape[0]

    if vmem_budget_bytes is None:
        vmem_budget_bytes = _vmem_budget_bytes()

    # H-chunk of the reduction: MXU-friendly 256, independent of VMEM ambitions.
    if th is None:
        th = 256 if H % 256 == 0 else 128
    assert th % 128 == 0 and H % th == 0

    # Token tile: multiple of 128; largest that fits the per-generation budget.
    if tm is None:
        tm_cap = min(1024, max(128, _round_up(T, 128)))
        tm = 128
        for cand in (1024, 768, 512, 384, 256, 128):
            if cand <= tm_cap and _working_set_bytes(cand, th, V) <= vmem_budget_bytes:
                tm = cand
                break
    else:
        tm = max(128, _round_up(tm, 128))
    # Last-resort shrink of th if even tm=128 overflows the budget (huge V).
    if _working_set_bytes(tm, th, V) > vmem_budget_bytes:
        th = 128

    T_pad = _round_up(T, tm)
    if T_pad != T:
        x2 = jnp.pad(x2, ((0, T_pad - T), (0, 0)))

    # bf16 operands on the MXU; biases stay f32.
    x_bf = x2.astype(jnp.bfloat16)
    w1 = params["w1"].astype(jnp.bfloat16)
    w2 = params["w2"].astype(jnp.bfloat16)
    w3 = params["w3"].astype(jnp.bfloat16)
    b1 = params["b1"].astype(jnp.float32)
    b2 = params["b2"].astype(jnp.float32)
    b3 = params["b3"].astype(jnp.float32)

    # Declared VMEM limit >= actual working set (+ headroom); never below it.
    ws = _working_set_bytes(tm, th, V)
    vmem_limit_bytes = int(ws + (16 << 20))

    grid = (T_pad // tm, H // th)
    out = pl.pallas_call(
        gated_mlp_kernel,
        out_shape=jax.ShapeDtypeStruct((T_pad, V), jnp.float32),
        grid=grid,
        in_specs=[
            pl.BlockSpec((tm, V), lambda i, h: (i, 0)),   # x tile (resident over h)
            pl.BlockSpec((V, th), lambda i, h: (0, h)),   # W1 H-chunk
            pl.BlockSpec((1, th), lambda i, h: (0, h)),   # b1 H-chunk
            pl.BlockSpec((V, th), lambda i, h: (0, h)),   # W2 H-chunk
            pl.BlockSpec((1, th), lambda i, h: (0, h)),   # b2 H-chunk
            pl.BlockSpec((th, V), lambda i, h: (h, 0)),   # W3 H-chunk
            pl.BlockSpec((1, V), lambda i, h: (0, 0)),    # b3 (added once)
        ],
        out_specs=pl.BlockSpec((tm, V), lambda i, h: (i, 0)),  # resident accumulator
        compiler_params=pltpu.CompilerParams(
            dimension_semantics=("parallel", "arbitrary"),
            vmem_limit_bytes=vmem_limit_bytes),
    )(x_bf, w1, b1, w2, b2, w3, b3)

    return out[:T].reshape(x.shape)


def init_params(key, V, H):
    ks = jax.random.split(key, 6)
    s = 0.05
    return dict(
        w1=jax.random.normal(ks[0], (V, H), jnp.float32) * s,  # Linear(V, H), math layout
        b1=jax.random.normal(ks[1], (1, H), jnp.float32) * s,
        w2=jax.random.normal(ks[2], (V, H), jnp.float32) * s,  # Linear(V, H)
        b2=jax.random.normal(ks[3], (1, H), jnp.float32) * s,
        w3=jax.random.normal(ks[4], (H, V), jnp.float32) * s,  # Linear(H, V)
        b3=jax.random.normal(ks[5], (1, V), jnp.float32) * s,
    )


def reference_forward(x, params):
    """Pure-JAX f32 reference mirroring MLP.forward."""
    V = x.shape[-1]
    x2 = x.reshape(-1, V).astype(jnp.float32)
    h1 = x2 @ params["w1"] + params["b1"]
    h2 = x2 @ params["w2"] + params["b2"]
    y = (h1 * (h2 * jax.nn.sigmoid(h2))) @ params["w3"] + params["b3"]
    return y.reshape(x.shape)


if __name__ == "__main__":
    # Small, lane-dense feature dims; S chosen so the token count (240) is not a
    # multiple of the tile -> exercises the zero-padding path as well.
    B, S, V, H = 2, 120, 256, 512

    key = jax.random.PRNGKey(0)
    kx, kp = jax.random.split(key)
    x = jax.random.normal(kx, (B, S, V), jnp.float32)
    params = init_params(kp, V, H)

    ref = reference_forward(x, params)

    # 1) auto-tiled path (per-generation tm/th selection).
    out_auto = jax.block_until_ready(gated_mlp_forward(x, params))
    assert out_auto.shape == x.shape
    assert jnp.allclose(out_auto, ref, atol=5e-2, rtol=5e-2), "auto-tiled mismatch"

    # 2) explicit small tiles: grid = (2, 2), multiple token tiles + padding.
    out_tiled = jax.block_until_ready(gated_mlp_forward(x, params, tm=128, th=256))
    assert jnp.allclose(out_tiled, ref, atol=5e-2, rtol=5e-2), "tiled mismatch"

    print("KERNEL_OK")
</pallas_src>

<mosaic_0001>
module attributes {stable_mosaic.version = 11 : i64} {
  func.func @gated_mlp_kernel(%arg0: i32, %arg1: i32, %arg2: memref<256x256xbf16, #tpu.memory_space<vmem>>, %arg3: memref<256x256xbf16, #tpu.memory_space<vmem>>, %arg4: memref<1x256xf32, #tpu.memory_space<vmem>>, %arg5: memref<256x256xbf16, #tpu.memory_space<vmem>>, %arg6: memref<1x256xf32, #tpu.memory_space<vmem>>, %arg7: memref<256x256xbf16, #tpu.memory_space<vmem>>, %arg8: memref<1x256xf32, #tpu.memory_space<vmem>>, %arg9: memref<256x256xf32, #tpu.memory_space<vmem>>) attributes {dimension_semantics = [#tpu.dimension_semantics<parallel>, #tpu.dimension_semantics<arbitrary>], iteration_bounds = array<i64: 1, 2>, scalar_prefetch = 0 : i64, scratch_operands = 0 : i64, tpu.core_type = #tpu.core_type<tc>, window_params = [{transform_indices = @transform_0, window_bounds = array<i64: 256, 256>}, {transform_indices = @transform_1, window_bounds = array<i64: 256, 256>}, {transform_indices = @transform_2, window_bounds = array<i64: 1, 256>}, {transform_indices = @transform_3, window_bounds = array<i64: 256, 256>}, {transform_indices = @transform_4, window_bounds = array<i64: 1, 256>}, {transform_indices = @transform_5, window_bounds = array<i64: 256, 256>}, {pipeline_mode = #tpu.pipeline_mode<synchronous>, transform_indices = @transform_6, window_bounds = array<i64: 1, 256>}, {transform_indices = @transform_7, window_bounds = array<i64: 256, 256>}]} {
    %c0_i32 = arith.constant 0 : i32
    %0 = arith.cmpi eq, %arg1, %c0_i32 : i32
    %1 = arith.extui %0 : i1 to i32
    %c0_i32_0 = arith.constant 0 : i32
    %2 = arith.cmpi ne, %1, %c0_i32_0 : i32
    scf.if %2 {
      %cst_20 = arith.constant 0.000000e+00 : f32
      %30 = vector.broadcast %cst_20 : f32 to vector<256x256xf32>
      %c0_21 = arith.constant 0 : index
      %c0_22 = arith.constant 0 : index
      %31 = vector.load %arg9[%c0_21, %c0_22] : memref<256x256xf32, #tpu.memory_space<vmem>>, vector<256x256xf32>
      tpu.vector_store %arg9[%c0_21, %c0_22], %30 {strides = array<i32>} : memref<256x256xf32, #tpu.memory_space<vmem>>, vector<256x256xf32>,
    } else {
    }
    %c0 = arith.constant 0 : index
    %c0_1 = arith.constant 0 : index
    %3 = vector.load %arg2[%c0, %c0_1] : memref<256x256xbf16, #tpu.memory_space<vmem>>, vector<256x256xbf16>
    %c0_2 = arith.constant 0 : index
    %c0_3 = arith.constant 0 : index
    %4 = vector.load %arg3[%c0_2, %c0_3] : memref<256x256xbf16, #tpu.memory_space<vmem>>, vector<256x256xbf16>
    %cst = arith.constant dense<0.000000e+00> : vector<256x256xf32>
    %5 = tpu.matmul %3, %4, %cst {dimension_numbers = #tpu.dot_dimension_numbers<[1], [0], [0], [1], [0, 0, 1, 1], [], []>} : vector<256x256xbf16>, vector<256x256xbf16>, vector<256x256xf32> -> vector<256x256xf32>
    %c0_4 = arith.constant 0 : index
    %c0_5 = arith.constant 0 : index
    %6 = vector.load %arg4[%c0_4, %c0_5] : memref<1x256xf32, #tpu.memory_space<vmem>>, vector<1x256xf32>
    %7 = vector.broadcast %6 : vector<1x256xf32> to vector<256x256xf32>
    %8 = arith.addf %5, %7 : vector<256x256xf32>
    %c0_6 = arith.constant 0 : index
    %c0_7 = arith.constant 0 : index
    %9 = vector.load %arg5[%c0_6, %c0_7] : memref<256x256xbf16, #tpu.memory_space<vmem>>, vector<256x256xbf16>
    %cst_8 = arith.constant dense<0.000000e+00> : vector<256x256xf32>
    %10 = tpu.matmul %3, %9, %cst_8 {dimension_numbers = #tpu.dot_dimension_numbers<[1], [0], [0], [1], [0, 0, 1, 1], [], []>} : vector<256x256xbf16>, vector<256x256xbf16>, vector<256x256xf32> -> vector<256x256xf32>
    %c0_9 = arith.constant 0 : index
    %c0_10 = arith.constant 0 : index
    %11 = vector.load %arg6[%c0_9, %c0_10] : memref<1x256xf32, #tpu.memory_space<vmem>>, vector<1x256xf32>
    %12 = vector.broadcast %11 : vector<1x256xf32> to vector<256x256xf32>
    %13 = arith.addf %10, %12 : vector<256x256xf32>
    %14 = arith.negf %13 : vector<256x256xf32>
    %15 = math.exp %14 : vector<256x256xf32>
    %cst_11 = arith.constant 1.000000e+00 : f32
    %16 = vector.broadcast %cst_11 : f32 to vector<256x256xf32>
    %17 = arith.addf %16, %15 : vector<256x256xf32>
    %18 = arith.divf %16, %17 : vector<256x256xf32>
    %19 = arith.mulf %13, %18 : vector<256x256xf32>
    %20 = arith.mulf %8, %19 : vector<256x256xf32>
    %21 = arith.truncf %20 : vector<256x256xf32> to vector<256x256xbf16>
    %c0_12 = arith.constant 0 : index
    %c0_13 = arith.constant 0 : index
    %22 = vector.load %arg9[%c0_12, %c0_13] : memref<256x256xf32, #tpu.memory_space<vmem>>, vector<256x256xf32>
    %c0_14 = arith.constant 0 : index
    %c0_15 = arith.constant 0 : index
    %23 = vector.load %arg7[%c0_14, %c0_15] : memref<256x256xbf16, #tpu.memory_space<vmem>>, vector<256x256xbf16>
    %cst_16 = arith.constant dense<0.000000e+00> : vector<256x256xf32>
    %24 = tpu.matmul %21, %23, %cst_16 {dimension_numbers = #tpu.dot_dimension_numbers<[1], [0], [0], [1], [0, 0, 1, 1], [], []>} : vector<256x256xbf16>, vector<256x256xbf16>, vector<256x256xf32> -> vector<256x256xf32>
    %25 = arith.addf %22, %24 : vector<256x256xf32>
    %c0_17 = arith.constant 0 : index
    %c0_18 = arith.constant 0 : index
    %26 = vector.load %arg9[%c0_17, %c0_18] : memref<256x256xf32, #tpu.memory_space<vmem>>, vector<256x256xf32>
    tpu.vector_store %arg9[%c0_17, %c0_18], %25 {strides = array<i32>} : memref<256x256xf32, #tpu.memory_space<vmem>>, vector<256x256xf32>,
    %c1_i32 = arith.constant 1 : i32
    %27 = arith.cmpi eq, %arg1, %c1_i32 : i32
    %28 = arith.extui %27 : i1 to i32
    %c0_i32_19 = arith.constant 0 : i32
    %29 = arith.cmpi ne, %28, %c0_i32_19 : i32
    scf.if %29 {
      %c0_20 = arith.constant 0 : index
      %c0_21 = arith.constant 0 : index
      %30 = vector.load %arg9[%c0_20, %c0_21] : memref<256x256xf32, #tpu.memory_space<vmem>>, vector<256x256xf32>
      %c0_22 = arith.constant 0 : index
      %c0_23 = arith.constant 0 : index
      %31 = vector.load %arg8[%c0_22, %c0_23] : memref<1x256xf32, #tpu.memory_space<vmem>>, vector<1x256xf32>
      %32 = vector.broadcast %31 : vector<1x256xf32> to vector<256x256xf32>
      %33 = arith.addf %30, %32 : vector<256x256xf32>
      %c0_24 = arith.constant 0 : index
      %c0_25 = arith.constant 0 : index
      %34 = vector.load %arg9[%c0_24, %c0_25] : memref<256x256xf32, #tpu.memory_space<vmem>>, vector<256x256xf32>
      tpu.vector_store %arg9[%c0_24, %c0_25], %33 {strides = array<i32>} : memref<256x256xf32, #tpu.memory_space<vmem>>, vector<256x256xf32>,
    } else {
    }
    return
  }
  func.func @transform_0(%arg0: i32, %arg1: i32) -> (i32, i32) {
    %c0_i32 = arith.constant 0 : i32
    %c0_i32_0 = arith.constant 0 : i32
    return %arg0, %c0_i32 : i32, i32
  }
  func.func @transform_1(%arg0: i32, %arg1: i32) -> (i32, i32) {
    %c0_i32 = arith.constant 0 : i32
    %c0_i32_0 = arith.constant 0 : i32
    return %c0_i32, %arg1 : i32, i32
  }
  func.func @transform_2(%arg0: i32, %arg1: i32) -> (i32, i32) {
    %c0_i32 = arith.constant 0 : i32
    %c0_i32_0 = arith.constant 0 : i32
    return %c0_i32, %arg1 : i32, i32
  }
  func.func @transform_3(%arg0: i32, %arg1: i32) -> (i32, i32) {
    %c0_i32 = arith.constant 0 : i32
    %c0_i32_0 = arith.constant 0 : i32
    return %c0_i32, %arg1 : i32, i32
  }
  func.func @transform_4(%arg0: i32, %arg1: i32) -> (i32, i32) {
    %c0_i32 = arith.constant 0 : i32
    %c0_i32_0 = arith.constant 0 : i32
    return %c0_i32, %arg1 : i32, i32
  }
  func.func @transform_5(%arg0: i32, %arg1: i32) -> (i32, i32) {
    %c0_i32 = arith.constant 0 : i32
    %c0_i32_0 = arith.constant 0 : i32
    return %arg1, %c0_i32 : i32, i32
  }
  func.func @transform_6(%arg0: i32, %arg1: i32) -> (i32, i32) {
    %c0_i32 = arith.constant 0 : i32
    %c0_i32_0 = arith.constant 0 : i32
    %c0_i32_1 = arith.constant 0 : i32
    return %c0_i32, %c0_i32_0 : i32, i32
  }
  func.func @transform_7(%arg0: i32, %arg1: i32) -> (i32, i32) {
    %c0_i32 = arith.constant 0 : i32
    %c0_i32_0 = arith.constant 0 : i32
    return %arg0, %c0_i32 : i32, i32
  }
}

</mosaic_0001>

<llo_original>
// kernel: tpu_custom_call.1
$region0: #{tpu_custom_call.1}
  #allocation0 [shape = 'u32[]', space=smem, size = 0x4, offset = 0x4, fixed_abs, tag = 'smem constant byte address 0x4 - core index']
  #allocation1 [shape = 'u32[144,128]{1,0:T(1,128)}', space=vmem, size = 0x12000, scoped, tag = 'internal scratch']
  %s0 = inlined_call_operand.hbm [shape: bf16[256,256], index: 0, kind: input, shape index: {}]
  %s1 = inlined_call_operand.hbm [shape: bf16[256,512], index: 1, kind: input, shape index: {}]
  %s2 = inlined_call_operand.hbm [shape: f32[1,512], index: 2, kind: input, shape index: {}]
  %s3 = inlined_call_operand.hbm [shape: bf16[256,512], index: 3, kind: input, shape index: {}]
  %s4 = inlined_call_operand.vmem [shape: f32[1,512], index: 4, kind: input, shape index: {}]
  %s5 = inlined_call_operand.hbm [shape: bf16[512,256], index: 5, kind: input, shape index: {}]
  %s6 = inlined_call_operand.vmem [shape: f32[1,256], index: 6, kind: input, shape index: {}]
  %s7 = inlined_call_operand.hbm [shape: f32[256,256], index: 7, kind: output, shape index: {}]
  %s8 = sld [smem:[#allocation0]]
  $region89: #{tpu_custom_call.1} parent=0
    _
  %s10 = ssub.s32 1, %s8
  %s11 = scalar_select 0, %s10, %s8
  $region1: #{tpu_custom_call.1} parent=0
    #allocation2 [shape = 'u8[131072]{0}', space=vmem, size = 0x20000, scoped, tag = 'input window, operand 0, single buffered']
    #allocation3 [shape = 's32[2]{0}', space=sflag, size = 0x8, scoped, tag = 'scoped memory for tpu_custom_call.1']
    #allocation4 [shape = 's32[2]{0}', space=sflag, size = 0x8, scoped, tag = 'scoped memory for tpu_custom_call.1']
    #allocation5 [shape = 'u8[262144]{0}', space=vmem, size = 0x40000, scoped, tag = 'input window, operand 1']
    #allocation6 [shape = 's32[2]{0}', space=sflag, size = 0x8, scoped, tag = 'scoped memory for tpu_custom_call.1']
    #allocation7 [shape = 'u8[2048]{0}', space=vmem, size = 0x800, scoped, tag = 'input window, operand 2']
    #allocation8 [shape = 'u8[262144]{0}', space=vmem, size = 0x40000, scoped, tag = 'input window, operand 3']
    #allocation9 [shape = 's32[2]{0}', space=sflag, size = 0x8, scoped, tag = 'scoped memory for tpu_custom_call.1']
    #allocation10 [shape = 'u8[262144]{0}', space=vmem, size = 0x40000, scoped, tag = 'input window, operand 5']
    #allocation11 [shape = 'u8[262144]{0}', space=vmem, size = 0x40000, scoped, tag = 'output window, operand 0, single buffered']
    %12 = vsyncpa [#allocation3], 0
    %13 = vsyncpa [#allocation6], 0
    %s14 = scalar_lea.sflag [#allocation6], 1
    %15 = vsyncpa %s14, 0
    %16 = vsyncpa [#allocation9], 0
    %s17 = scalar_lea.sflag [#allocation9], 1
    %18 = vsyncpa %s17, 0
    %19 = vsyncpa [#allocation4], 0
    loop: start=0, step=1, limit=4
    $region2: #{tpu_custom_call.1} parent=1 // loop_pre_header
      _
    $region3: #{tpu_custom_call.1} parent=1 // loop_header
      %s21 = sphi 0, %s25
      %p22 = scmp.ge.s32.totalorder %s21, 4
      %s28 = sphi 0, %s40
      %s29 = sphi 0, %s36
      %s30 = sphi 0, %s28
      %s31 = sphi 0, %s29
      %s32 = sphi 0, %s30
      %s33 = sphi 0, %s31
      %s43 = sphi 0, %s45
      %s46 = sphi 0, %s43
      %s47 = sphi 0, %s46
      %s63 = sphi 0, %s47
      %s69 = sphi 0, %s71
      %s72 = sphi 0, %s69
      %s73 = sphi 0, %s72
      %s89 = sphi 0, %s73
      %s95 = sphi 0, %s97
      %s98 = sphi 0, %s95
      %s99 = sphi 0, %s98
      %s115 = sphi 0, %s99
      %s121 = sphi 0, %s123
      %s124 = sphi 0, %s121
      %s125 = sphi 0, %s124
      %s141 = sphi 0, %s125
      %s147 = sphi 0, %s149
      %s150 = sphi 0, %s147
      %s151 = sphi 0, %s150
      %s167 = sphi 0, %s151
      %s173 = sphi 0, %s175
      %s176 = sphi 0, %s173
      %s177 = sphi 0, %s176
      %s193 = sphi 0, %s177
      %s197 = sphi 0, %s197
      %s199 = sphi 0, %s197
      %s200 = sphi 0, %s199
      %s214 = sphi 0, %s200
      %s220 = sphi 0, %s222
      %s223 = sphi 0, %s220
      %s224 = sphi 0, %s223
      %s240 = sphi 0, %s224
    $region4: #{tpu_custom_call.1} parent=1 // loop_header_branch
      %24 = sbr.rel (%p22) target = $region8
    $region5: #{tpu_custom_call.1} parent=1 // loop_body
      %s26 = ssub.s32 %s21, 1
      %s27 = ssub.s32 %s21, 2
      %s34 = sadd.s32 1, %s29
      %p35 = scmp.ge.s32.totalorder %s34, 2
      %s36 = scalar_select %p35, 0, %s34
      %s37 = sadd.s32 1, %s28
      %s38 = scalar_select %p35, %s37, %s28
      %p39 = scmp.ge.s32.totalorder %s38, 1
      %s40 = scalar_select %p39, 0, %s38
      %s41 = ssub.s32 %s28, %s40
      %p42 = scmp.eq.s32.totalorder %s41, 0
      %s44 = sadd.s32 %s43, 1
      %s45 = scalar_select %p42, %s43, %s44
      %p48 = pneg %p42
      %p49 = scmp.eq.s32.totalorder %s21, 1
      %p50 = por %p48, %p49
      %p51 = scmp.ne.s32.totalorder %s43, %s46
      %p52 = scmp.eq.s32.totalorder %s21, 0
      %p53 = por %p51, %p52
      %p54 = scmp.ne.s32.totalorder %s43, %s46
      %p55 = scmp.eq.s32.totalorder %s26, 1
      %p56 = por %p54, %p55
      %p57 = scmp.ne.s32.totalorder %s46, %s47
      %p58 = scmp.eq.s32.totalorder %s26, 0
      %p59 = por %p57, %p58
      %p60 = scmp.ne.s32.totalorder %s46, %s47
      %p61 = scmp.eq.s32.totalorder %s27, 1
      %p62 = por %p60, %p61
      %p64 = scmp.ne.s32.totalorder %s47, %s63
      %p65 = scmp.eq.s32.totalorder %s27, 0
      %p66 = por %p64, %p65
      %s67 = ssub.s32 %s29, %s36
      %p68 = scmp.eq.s32.totalorder %s67, 0
      %s70 = sadd.s32 %s69, 1
      %s71 = scalar_select %p68, %s69, %s70
      %p74 = pneg %p68
      %p75 = scmp.eq.s32.totalorder %s21, 1
      %p76 = por %p74, %p75
      %p77 = scmp.ne.s32.totalorder %s69, %s72
      %p78 = scmp.eq.s32.totalorder %s21, 0
      %p79 = por %p77, %p78
      %p80 = scmp.ne.s32.totalorder %s69, %s72
      %p81 = scmp.eq.s32.totalorder %s26, 1
      %p82 = por %p80, %p81
      %p83 = scmp.ne.s32.totalorder %s72, %s73
      %p84 = scmp.eq.s32.totalorder %s26, 0
      %p85 = por %p83, %p84
      %p86 = scmp.ne.s32.totalorder %s72, %s73
      %p87 = scmp.eq.s32.totalorder %s27, 1
      %p88 = por %p86, %p87
      %p90 = scmp.ne.s32.totalorder %s73, %s89
      %p91 = scmp.eq.s32.totalorder %s27, 0
      %p92 = por %p90, %p91
      %s93 = ssub.s32 %s29, %s36
      %p94 = scmp.eq.s32.totalorder %s93, 0
      %s96 = sadd.s32 %s95, 1
      %s97 = scalar_select %p94, %s95, %s96
      %p100 = pneg %p94
      %p101 = scmp.eq.s32.totalorder %s21, 1
      %p102 = por %p100, %p101
      %p103 = scmp.ne.s32.totalorder %s95, %s98
      %p104 = scmp.eq.s32.totalorder %s21, 0
      %p105 = por %p103, %p104
      %p106 = scmp.ne.s32.totalorder %s95, %s98
      %p107 = scmp.eq.s32.totalorder %s26, 1
      %p108 = por %p106, %p107
      %p109 = scmp.ne.s32.totalorder %s98, %s99
      %p110 = scmp.eq.s32.totalorder %s26, 0
      %p111 = por %p109, %p110
      %p112 = scmp.ne.s32.totalorder %s98, %s99
      %p113 = scmp.eq.s32.totalorder %s27, 1
      %p114 = por %p112, %p113
      %p116 = scmp.ne.s32.totalorder %s99, %s115
      %p117 = scmp.eq.s32.totalorder %s27, 0
      %p118 = por %p116, %p117
      %s119 = ssub.s32 %s29, %s36
      %p120 = scmp.eq.s32.totalorder %s119, 0
      %s122 = sadd.s32 %s121, 1
      %s123 = scalar_select %p120, %s121, %s122
      %p126 = pneg %p120
      %p127 = scmp.eq.s32.totalorder %s21, 1
      %p128 = por %p126, %p127
      %p129 = scmp.ne.s32.totalorder %s121, %s124
      %p130 = scmp.eq.s32.totalorder %s21, 0
      %p131 = por %p129, %p130
      %p132 = scmp.ne.s32.totalorder %s121, %s124
      %p133 = scmp.eq.s32.totalorder %s26, 1
      %p134 = por %p132, %p133
      %p135 = scmp.ne.s32.totalorder %s124, %s125
      %p136 = scmp.eq.s32.totalorder %s26, 0
      %p137 = por %p135, %p136
      %p138 = scmp.ne.s32.totalorder %s124, %s125
      %p139 = scmp.eq.s32.totalorder %s27, 1
      %p140 = por %p138, %p139
      %p142 = scmp.ne.s32.totalorder %s125, %s141
      %p143 = scmp.eq.s32.totalorder %s27, 0
      %p144 = por %p142, %p143
      %s145 = ssub.s32 %s29, %s36
      %p146 = scmp.eq.s32.totalorder %s145, 0
      %s148 = sadd.s32 %s147, 1
      %s149 = scalar_select %p146, %s147, %s148
      %p152 = pneg %p146
      %p153 = scmp.eq.s32.totalorder %s21, 1
      %p154 = por %p152, %p153
      %p155 = scmp.ne.s32.totalorder %s147, %s150
      %p156 = scmp.eq.s32.totalorder %s21, 0
      %p157 = por %p155, %p156
      %p158 = scmp.ne.s32.totalorder %s147, %s150
      %p159 = scmp.eq.s32.totalorder %s26, 1
      %p160 = por %p158, %p159
      %p161 = scmp.ne.s32.totalorder %s150, %s151
      %p162 = scmp.eq.s32.totalorder %s26, 0
      %p163 = por %p161, %p162
      %p164 = scmp.ne.s32.totalorder %s150, %s151
      %p165 = scmp.eq.s32.totalorder %s27, 1
      %p166 = por %p164, %p165
      %p168 = scmp.ne.s32.totalorder %s151, %s167
      %p169 = scmp.eq.s32.totalorder %s27, 0
      %p170 = por %p168, %p169
      %s171 = ssub.s32 %s29, %s36
      %p172 = scmp.eq.s32.totalorder %s171, 0
      %s174 = sadd.s32 %s173, 1
      %s175 = scalar_select %p172, %s173, %s174
      %p178 = pneg %p172
      %p179 = scmp.eq.s32.totalorder %s21, 1
      %p180 = por %p178, %p179
      %p181 = scmp.ne.s32.totalorder %s173, %s176
      %p182 = scmp.eq.s32.totalorder %s21, 0
      %p183 = por %p181, %p182
      %p184 = scmp.ne.s32.totalorder %s173, %s176
      %p185 = scmp.eq.s32.totalorder %s26, 1
      %p186 = por %p184, %p185
      %p187 = scmp.ne.s32.totalorder %s176, %s177
      %p188 = scmp.eq.s32.totalorder %s26, 0
      %p189 = por %p187, %p188
      %p190 = scmp.ne.s32.totalorder %s176, %s177
      %p191 = scmp.eq.s32.totalorder %s27, 1
      %p192 = por %p190, %p191
      %p194 = scmp.ne.s32.totalorder %s177, %s193
      %p195 = scmp.eq.s32.totalorder %s27, 0
      %p196 = por %p194, %p195
      %s198 = sadd.s32 %s197, 1
      %p201 = scmp.eq.s32.totalorder %s21, 1
      %p202 = scmp.ne.s32.totalorder %s197, %s199
      %p203 = scmp.eq.s32.totalorder %s21, 0
      %p204 = por %p202, %p203
      %p205 = scmp.ne.s32.totalorder %s197, %s199
      %p206 = scmp.eq.s32.totalorder %s26, 1
      %p207 = por %p205, %p206
      %p208 = scmp.ne.s32.totalorder %s199, %s200
      %p209 = scmp.eq.s32.totalorder %s26, 0
      %p210 = por %p208, %p209
      %p211 = scmp.ne.s32.totalorder %s199, %s200
      %p212 = scmp.eq.s32.totalorder %s27, 1
      %p213 = por %p211, %p212
      %p215 = scmp.ne.s32.totalorder %s200, %s214
      %p216 = scmp.eq.s32.totalorder %s27, 0
      %p217 = por %p215, %p216
      %s218 = ssub.s32 %s28, %s40
      %p219 = scmp.eq.s32.totalorder %s218, 0
      %s221 = sadd.s32 %s220, 1
      %s222 = scalar_select %p219, %s220, %s221
      %p225 = pneg %p219
      %p226 = scmp.eq.s32.totalorder %s21, 1
      %p227 = por %p225, %p226
      %p228 = scmp.ne.s32.totalorder %s220, %s223
      %p229 = scmp.eq.s32.totalorder %s21, 0
      %p230 = por %p228, %p229
      %p231 = scmp.ne.s32.totalorder %s220, %s223
      %p232 = scmp.eq.s32.totalorder %s26, 1
      %p233 = por %p231, %p232
      %p234 = scmp.ne.s32.totalorder %s223, %s224
      %p235 = scmp.eq.s32.totalorder %s26, 0
      %p236 = por %p234, %p235
      %p237 = scmp.ne.s32.totalorder %s223, %s224
      %p238 = scmp.eq.s32.totalorder %s27, 1
      %p239 = por %p237, %p238
      %p241 = scmp.ne.s32.totalorder %s224, %s240
      %p242 = scmp.eq.s32.totalorder %s27, 0
      %p243 = por %p241, %p242
      %p244 = scmp.le.s32.totalorder 1, %s21
      %p245 = scmp.lt.s32.totalorder %s21, 3
      %p246 = pnand %p244, %p245
      %p247 = pneg %p246
      // Predicated region
      $region9: #{tpu_custom_call.1} parent=5 // pred_check
        _
      $region10: #{tpu_custom_call.1} parent=5 // pred_check_branch
        %249 = sbr.rel (%p246) target = $region12
      $region11: #{tpu_custom_call.1} parent=5 // pred_region
        %s250 = ssub.s32 %s21, 1
        // Predicated region
        $region13: #{tpu_custom_call.1} parent=11 // pred_check
          %p251 = pneg %p59
        $region14: #{tpu_custom_call.1} parent=11 // pred_check_branch
          %253 = sbr.rel (%p251) target = $region16
        $region15: #{tpu_custom_call.1} parent=11 // pred_region
          %s254 = smul.u32 32, %s30
          %s256 = ssub.s32 4096, 4096
          %257 = vsyncadd [#allocation3], %s256
          %s258 = smul.addr %s254, 2
          %s259 = smul.addr %s258, 64
          %s260 = scalar_lea.hbm %s0, %s259
          %s261 = sshll.u32 [#allocation2], 4
          %s262 = int_to_ptr.vmem [resolvable:$true] %s261
          %267 = dma.hbm_to_vmem [thread:$0]  %s260, 4096, %s262, [#allocation3], 128, 128, 8
        $region16: #{tpu_custom_call.1} parent=11 // pred_fallthru
          _
        // Predicated region
        $region17: #{tpu_custom_call.1} parent=11 // pred_check
          %p268 = pneg %p210
        $region18: #{tpu_custom_call.1} parent=11 // pred_check_branch
          %270 = sbr.rel (%p268) target = $region20
        $region19: #{tpu_custom_call.1} parent=11 // pred_region
          _
        $region20: #{tpu_custom_call.1} parent=11 // pred_fallthru
          _
      $region12: #{tpu_custom_call.1} parent=5 // pred_fallthru
        _
      %p271 = scmp.lt.s32.totalorder %s21, 2
      // Predicated region
      $region21: #{tpu_custom_call.1} parent=5 // pred_check
        %p272 = pneg %p271
      $region22: #{tpu_custom_call.1} parent=5 // pred_check_branch
        %274 = sbr.rel (%p272) target = $region24
      $region23: #{tpu_custom_call.1} parent=5 // pred_region
        // Predicated region
        $region25: #{tpu_custom_call.1} parent=23 // pred_check
          %p275 = pneg %p79
        $region26: #{tpu_custom_call.1} parent=23 // pred_check_branch
          %277 = sbr.rel (%p275) target = $region28
        $region27: #{tpu_custom_call.1} parent=23 // pred_region
          %s278 = sand.u32 %s21, 1
          %s279 = scalar_lea.sflag [#allocation6], %s278
          %s280 = sand.u32 %s69, 1
          %s281 = smul.addr %s280, 256
          %s282 = scalar_lea.vmem [#allocation5], %s281
          %s283 = smul.u32 2, %s29
          %s285 = ssub.s32 4096, 4096
          %286 = vsyncadd %s279, %s285
          %s287 = smul.addr %s283, 64
          %s288 = scalar_lea.hbm %s1, %s287
          %s289 = sshll.u32 %s282, 4
          %s290 = int_to_ptr.vmem [resolvable:$true] %s289
          %295 = dma.hbm_to_vmem [thread:$0]  %s288, 4096, %s290, %s279, 256, 128, 8
        $region28: #{tpu_custom_call.1} parent=23 // pred_fallthru
          _
        // Predicated region
        $region29: #{tpu_custom_call.1} parent=23 // pred_check
          %p296 = pneg %p105
        $region30: #{tpu_custom_call.1} parent=23 // pred_check_branch
          %298 = sbr.rel (%p296) target = $region32
        $region31: #{tpu_custom_call.1} parent=23 // pred_region
          %s299 = sand.u32 %s21, 1
          %s300 = scalar_lea.sflag [#allocation6], %s299
          %s301 = sand.u32 %s95, 1
          %s302 = smul.addr %s301, 2
          %s303 = scalar_lea.vmem [#allocation7], %s302
          %s304 = smul.u32 2, %s29
          %s306 = ssub.s32 32, 32
          %307 = vsyncadd %s300, %s306
          %s308 = smul.addr %s304, 16
          %s309 = scalar_lea.hbm %s2, %s308
          %s311 = sshll.u32 %s303, 4
          %s312 = int_to_ptr.vmem [resolvable:$true] %s311
          %314 = dma.hbm_to_vmem [thread:$0]  %s309, 32, %s312, %s300
        $region32: #{tpu_custom_call.1} parent=23 // pred_fallthru
          _
        // Predicated region
        $region33: #{tpu_custom_call.1} parent=23 // pred_check
          %p315 = pneg %p131
        $region34: #{tpu_custom_call.1} parent=23 // pred_check_branch
          %317 = sbr.rel (%p315) target = $region36
        $region35: #{tpu_custom_call.1} parent=23 // pred_region
          %s318 = sand.u32 %s21, 1
          %s319 = scalar_lea.sflag [#allocation9], %s318
          %s320 = sand.u32 %s121, 1
          %s321 = smul.addr %s320, 256
          %s322 = scalar_lea.vmem [#allocation8], %s321
          %s323 = smul.u32 2, %s29
          %s325 = ssub.s32 4096, 4096
          %326 = vsyncadd %s319, %s325
          %s327 = smul.addr %s323, 64
          %s328 = scalar_lea.hbm %s3, %s327
          %s329 = sshll.u32 %s322, 4
          %s330 = int_to_ptr.vmem [resolvable:$true] %s329
          %335 = dma.hbm_to_vmem [thread:$0]  %s328, 4096, %s330, %s319, 256, 128, 8
        $region36: #{tpu_custom_call.1} parent=23 // pred_fallthru
          _
        // Predicated region
        $region37: #{tpu_custom_call.1} parent=23 // pred_check
          %p336 = pneg %p157
        $region38: #{tpu_custom_call.1} parent=23 // pred_check_branch
          %338 = sbr.rel (%p336) target = $region40
        $region39: #{tpu_custom_call.1} parent=23 // pred_region
          %s339 = smul.u32 2, %s29
          %p340 = scmp.lt.s32.totalorder %s339, 3
          %s341 = scalar_select %p340, %s339, 3
          %s342 = scalar_lea.vmem %s4, %s341
          %s343 = smul.u32 2, %s29
        $region40: #{tpu_custom_call.1} parent=23 // pred_fallthru
          _
        // Predicated region
        $region41: #{tpu_custom_call.1} parent=23 // pred_check
          %p344 = pneg %p183
        $region42: #{tpu_custom_call.1} parent=23 // pred_check_branch
          %346 = sbr.rel (%p344) target = $region44
        $region43: #{tpu_custom_call.1} parent=23 // pred_region
          %s347 = sand.u32 %s21, 1
          %s348 = scalar_lea.sflag [#allocation9], %s347
          %s349 = sand.u32 %s173, 1
          %s350 = smul.addr %s349, 256
          %s351 = scalar_lea.vmem [#allocation10], %s350
          %s352 = smul.u32 32, %s29
          %s354 = ssub.s32 4096, 4096
          %355 = vsyncadd %s348, %s354
          %s356 = smul.addr %s352, 2
          %s357 = smul.addr %s356, 64
          %s358 = scalar_lea.hbm %s5, %s357
          %s359 = sshll.u32 %s351, 4
          %s360 = int_to_ptr.vmem [resolvable:$true] %s359
          %365 = dma.hbm_to_vmem [thread:$0]  %s358, 4096, %s360, %s348, 128, 128, 8
        $region44: #{tpu_custom_call.1} parent=23 // pred_fallthru
          _
      $region24: #{tpu_custom_call.1} parent=5 // pred_fallthru
        _
      %p366 = scmp.le.s32.totalorder 1, %s21
      %p367 = scmp.lt.s32.totalorder %s21, 3
      %p368 = pnand %p366, %p367
      %p369 = pneg %p368
      // Predicated region
      $region45: #{tpu_custom_call.1} parent=5 // pred_check
        _
      $region46: #{tpu_custom_call.1} parent=5 // pred_check_branch
        %371 = sbr.rel (%p368) target = $region48
      $region47: #{tpu_custom_call.1} parent=5 // pred_region
        %s372 = ssub.s32 %s21, 1
        // Predicated region
        $region49: #{tpu_custom_call.1} parent=47 // pred_check
          %p373 = pneg %p59
        $region50: #{tpu_custom_call.1} parent=47 // pred_check_branch
          %375 = sbr.rel (%p373) target = $region52
        $region51: #{tpu_custom_call.1} parent=47 // pred_region
          %376 = dma.done [#allocation3], 4096
        $region52: #{tpu_custom_call.1} parent=47 // pred_fallthru
          _
        %s377 = sand.u32 %s26, 1
        %s378 = scalar_lea.sflag [#allocation6], %s377
        %s379 = sand.u32 %s72, 1
        %s380 = smul.addr %s379, 256
        %s381 = scalar_lea.vmem [#allocation5], %s380
        // Predicated region
        $region53: #{tpu_custom_call.1} parent=47 // pred_check
          %p382 = pneg %p85
        $region54: #{tpu_custom_call.1} parent=47 // pred_check_branch
          %384 = sbr.rel (%p382) target = $region56
        $region55: #{tpu_custom_call.1} parent=47 // pred_region
          %385 = dma.done %s378, 4096
        $region56: #{tpu_custom_call.1} parent=47 // pred_fallthru
          _
        %s386 = sand.u32 %s26, 1
        %s387 = scalar_lea.sflag [#allocation6], %s386
        %s388 = sand.u32 %s98, 1
        %s389 = smul.addr %s388, 2
        %s390 = scalar_lea.vmem [#allocation7], %s389
        // Predicated region
        $region57: #{tpu_custom_call.1} parent=47 // pred_check
          %p391 = pneg %p111
        $region58: #{tpu_custom_call.1} parent=47 // pred_check_branch
          %393 = sbr.rel (%p391) target = $region60
        $region59: #{tpu_custom_call.1} parent=47 // pred_region
          %394 = dma.done %s387, 32
        $region60: #{tpu_custom_call.1} parent=47 // pred_fallthru
          _
        %s395 = sand.u32 %s26, 1
        %s396 = scalar_lea.sflag [#allocation9], %s395
        %s397 = sand.u32 %s124, 1
        %s398 = smul.addr %s397, 256
        %s399 = scalar_lea.vmem [#allocation8], %s398
        // Predicated region
        $region61: #{tpu_custom_call.1} parent=47 // pred_check
          %p400 = pneg %p137
        $region62: #{tpu_custom_call.1} parent=47 // pred_check_branch
          %402 = sbr.rel (%p400) target = $region64
        $region63: #{tpu_custom_call.1} parent=47 // pred_region
          %403 = dma.done %s396, 4096
        $region64: #{tpu_custom_call.1} parent=47 // pred_fallthru
          _
        %s404 = sand.u32 %s26, 1
        %s405 = scalar_lea.sflag [#allocation9], %s404
        %s406 = sand.u32 %s176, 1
        %s407 = smul.addr %s406, 256
        %s408 = scalar_lea.vmem [#allocation10], %s407
        // Predicated region
        $region65: #{tpu_custom_call.1} parent=47 // pred_check
          %p409 = pneg %p189
        $region66: #{tpu_custom_call.1} parent=47 // pred_check_branch
          %411 = sbr.rel (%p409) target = $region68
        $region67: #{tpu_custom_call.1} parent=47 // pred_region
          %412 = dma.done %s405, 4096
        $region68: #{tpu_custom_call.1} parent=47 // pred_fallthru
          _
        %p413 = pneg %p59
        %p414 = pneg %p56
        %s415 = sand.u32 %s26, 1
        %s416 = scalar_lea.sflag [#allocation6], %s415
        %s417 = sand.u32 %s72, 1
        %s418 = smul.addr %s417, 256
        %s419 = scalar_lea.vmem [#allocation5], %s418
        %p420 = pneg %p85
        %p421 = pneg %p82
        %s422 = sand.u32 %s26, 1
        %s423 = scalar_lea.sflag [#allocation6], %s422
        %s424 = sand.u32 %s98, 1
        %s425 = smul.addr %s424, 2
        %s426 = scalar_lea.vmem [#allocation7], %s425
        %p427 = pneg %p111
        %p428 = pneg %p108
        %s429 = sand.u32 %s26, 1
        %s430 = scalar_lea.sflag [#allocation9], %s429
        %s431 = sand.u32 %s124, 1
        %s432 = smul.addr %s431, 256
        %s433 = scalar_lea.vmem [#allocation8], %s432
        %p434 = pneg %p137
        %p435 = pneg %p134
        %s436 = smul.u32 2, %s31
        %p437 = scmp.lt.s32.totalorder %s436, 3
        %s438 = scalar_select %p437, %s436, 3
        %s439 = scalar_lea.vmem %s4, %s438
        %p440 = pneg %p163
        %p441 = pneg %p160
        %s442 = sand.u32 %s26, 1
        %s443 = scalar_lea.sflag [#allocation9], %s442
        %s444 = sand.u32 %s176, 1
        %s445 = smul.addr %s444, 256
        %s446 = scalar_lea.vmem [#allocation10], %s445
        %p447 = pneg %p189
        %p448 = pneg %p186
        %p449 = pneg %p210
        %p450 = pneg %p207
        %p451 = pneg %p236
        %p452 = pneg %p233
        %s453 = smul.u32 32, %s30
        %s454 = smul.u32 2, %s31
        %s455 = smul.u32 2, %s31
        %s456 = smul.u32 2, %s31
        %s457 = smul.u32 2, %s31
        %p458 = scmp.lt.s32.totalorder %s457, 3
        %s459 = scalar_select %p458, %s457, 3
        %s460 = scalar_lea.vmem %s4, %s459
        %s461 = smul.u32 2, %s31
        %s462 = smul.u32 32, %s31
        %s463 = smul.u32 32, %s30
        %p464 = scmp.eq.s32.totalorder %s31, 0
        // Predicated region
        $region69: #{tpu_custom_call.1} parent=47 // pred_check
          %p465 = pneg %p464
        $region70: #{tpu_custom_call.1} parent=47 // pred_check_branch
          %467 = sbr.rel (%p465) target = $region72
        $region71: #{tpu_custom_call.1} parent=47 // pred_region
          %468 = vst [vmem:[#allocation11] sm:$0xff] 0.0
          %469 = vst [vmem:[#allocation11 + $0x8] sm:$0xff] 0.0
          %470 = vst [vmem:[#allocation11 + $0x10] sm:$0xff] 0.0
          %471 = vst [vmem:[#allocation11 + $0x18] sm:$0xff] 0.0
          %472 = vst [vmem:[#allocation11 + $0x20] sm:$0xff] 0.0
          %473 = vst [vmem:[#allocation11 + $0x28] sm:$0xff] 0.0
          %474 = vst [vmem:[#allocation11 + $0x30] sm:$0xff] 0.0
          %475 = vst [vmem:[#allocation11 + $0x38] sm:$0xff] 0.0
          %476 = vst [vmem:[#allocation11 + $0x40] sm:$0xff] 0.0
          %477 = vst [vmem:[#allocation11 + $0x48] sm:$0xff] 0.0
          %478 = vst [vmem:[#allocation11 + $0x50] sm:$0xff] 0.0
          %479 = vst [vmem:[#allocation11 + $0x58] sm:$0xff] 0.0
          %480 = vst [vmem:[#allocation11 + $0x60] sm:$0xff] 0.0
          %481 = vst [vmem:[#allocation11 + $0x68] sm:$0xff] 0.0
          %482 = vst [vmem:[#allocation11 + $0x70] sm:$0xff] 0.0
          %483 = vst [vmem:[#allocation11 + $0x78] sm:$0xff] 0.0
          %484 = vst [vmem:[#allocation11 + $0x80] sm:$0xff] 0.0
          %485 = vst [vmem:[#allocation11 + $0x88] sm:$0xff] 0.0
          %486 = vst [vmem:[#allocation11 + $0x90] sm:$0xff] 0.0
          %487 = vst [vmem:[#allocation11 + $0x98] sm:$0xff] 0.0
          %488 = vst [vmem:[#allocation11 + $0xa0] sm:$0xff] 0.0
          %489 = vst [vmem:[#allocation11 + $0xa8] sm:$0xff] 0.0
          %490 = vst [vmem:[#allocation11 + $0xb0] sm:$0xff] 0.0
          %491 = vst [vmem:[#allocation11 + $0xb8] sm:$0xff] 0.0
          %492 = vst [vmem:[#allocation11 + $0xc0] sm:$0xff] 0.0
          %493 = vst [vmem:[#allocation11 + $0xc8] sm:$0xff] 0.0
          %494 = vst [vmem:[#allocation11 + $0xd0] sm:$0xff] 0.0
          %495 = vst [vmem:[#allocation11 + $0xd8] sm:$0xff] 0.0
          %496 = vst [vmem:[#allocation11 + $0xe0] sm:$0xff] 0.0
          %497 = vst [vmem:[#allocation11 + $0xe8] sm:$0xff] 0.0
          %498 = vst [vmem:[#allocation11 + $0xf0] sm:$0xff] 0.0
          %499 = vst [vmem:[#allocation11 + $0xf8] sm:$0xff] 0.0
          %500 = vst [vmem:[#allocation11 + $0x100] sm:$0xff] 0.0
          %501 = vst [vmem:[#allocation11 + $0x108] sm:$0xff] 0.0
          %502 = vst [vmem:[#allocation11 + $0x110] sm:$0xff] 0.0
          %503 = vst [vmem:[#allocation11 + $0x118] sm:$0xff] 0.0
          %504 = vst [vmem:[#allocation11 + $0x120] sm:$0xff] 0.0
          %505 = vst [vmem:[#allocation11 + $0x128] sm:$0xff] 0.0
          %506 = vst [vmem:[#allocation11 + $0x130] sm:$0xff] 0.0
          %507 = vst [vmem:[#allocation11 + $0x138] sm:$0xff] 0.0
          %508 = vst [vmem:[#allocation11 + $0x140] sm:$0xff] 0.0
          %509 = vst [vmem:[#allocation11 + $0x148] sm:$0xff] 0.0
          %510 = vst [vmem:[#allocation11 + $0x150] sm:$0xff] 0.0
          %511 = vst [vmem:[#allocation11 + $0x158] sm:$0xff] 0.0
          %512 = vst [vmem:[#allocation11 + $0x160] sm:$0xff] 0.0
          %513 = vst [vmem:[#allocation11 + $0x168] sm:$0xff] 0.0
          %514 = vst [vmem:[#allocation11 + $0x170] sm:$0xff] 0.0
          %515 = vst [vmem:[#allocation11 + $0x178] sm:$0xff] 0.0
          %516 = vst [vmem:[#allocation11 + $0x180] sm:$0xff] 0.0
          %517 = vst [vmem:[#allocation11 + $0x188] sm:$0xff] 0.0
          %518 = vst [vmem:[#allocation11 + $0x190] sm:$0xff] 0.0
          %519 = vst [vmem:[#allocation11 + $0x198] sm:$0xff] 0.0
          %520 = vst [vmem:[#allocation11 + $0x1a0] sm:$0xff] 0.0
          %521 = vst [vmem:[#allocation11 + $0x1a8] sm:$0xff] 0.0
          %522 = vst [vmem:[#allocation11 + $0x1b0] sm:$0xff] 0.0
          %523 = vst [vmem:[#allocation11 + $0x1b8] sm:$0xff] 0.0
          %524 = vst [vmem:[#allocation11 + $0x1c0] sm:$0xff] 0.0
          %525 = vst [vmem:[#allocation11 + $0x1c8] sm:$0xff] 0.0
          %526 = vst [vmem:[#allocation11 + $0x1d0] sm:$0xff] 0.0
          %527 = vst [vmem:[#allocation11 + $0x1d8] sm:$0xff] 0.0
          %528 = vst [vmem:[#allocation11 + $0x1e0] sm:$0xff] 0.0
          %529 = vst [vmem:[#allocation11 + $0x1e8] sm:$0xff] 0.0
          %530 = vst [vmem:[#allocation11 + $0x1f0] sm:$0xff] 0.0
          %531 = vst [vmem:[#allocation11 + $0x1f8] sm:$0xff] 0.0
        $region72: #{tpu_custom_call.1} parent=47 // pred_fallthru
          _
        %v532 = vld [vmem:[#allocation2] sm:$0xff]
        %v533 = vld [vmem:[#allocation2 + $0x8] sm:$0xff]
        %v534 = vld [vmem:[#allocation2 + $0x10] sm:$0xff]
        %v535 = vld [vmem:[#allocation2 + $0x18] sm:$0xff]
        %v536 = vld [vmem:[#allocation2 + $0x20] sm:$0xff]
        %v537 = vld [vmem:[#allocation2 + $0x28] sm:$0xff]
        %v538 = vld [vmem:[#allocation2 + $0x30] sm:$0xff]
        %v539 = vld [vmem:[#allocation2 + $0x38] sm:$0xff]
        %v540 = vld [vmem:[#allocation2 + $0x40] sm:$0xff]
        %v541 = vld [vmem:[#allocation2 + $0x48] sm:$0xff]
        %v542 = vld [vmem:[#allocation2 + $0x50] sm:$0xff]
        %v543 = vld [vmem:[#allocation2 + $0x58] sm:$0xff]
        %v544 = vld [vmem:[#allocation2 + $0x60] sm:$0xff]
        %v545 = vld [vmem:[#allocation2 + $0x68] sm:$0xff]
        %v546 = vld [vmem:[#allocation2 + $0x70] sm:$0xff]
        %v547 = vld [vmem:[#allocation2 + $0x78] sm:$0xff]
        %v548 = vld [vmem:[#allocation2 + $0x80] sm:$0xff]
        %v549 = vld [vmem:[#allocation2 + $0x88] sm:$0xff]
        %v550 = vld [vmem:[#allocation2 + $0x90] sm:$0xff]
        %v551 = vld [vmem:[#allocation2 + $0x98] sm:$0xff]
        %v552 = vld [vmem:[#allocation2 + $0xa0] sm:$0xff]
        %v553 = vld [vmem:[#allocation2 + $0xa8] sm:$0xff]
        %v554 = vld [vmem:[#allocation2 + $0xb0] sm:$0xff]
        %v555 = vld [vmem:[#allocation2 + $0xb8] sm:$0xff]
        %v556 = vld [vmem:[#allocation2 + $0xc0] sm:$0xff]
        %v557 = vld [vmem:[#allocation2 + $0xc8] sm:$0xff]
        %v558 = vld [vmem:[#allocation2 + $0xd0] sm:$0xff]
        %v559 = vld [vmem:[#allocation2 + $0xd8] sm:$0xff]
        %v560 = vld [vmem:[#allocation2 + $0xe0] sm:$0xff]
        %v561 = vld [vmem:[#allocation2 + $0xe8] sm:$0xff]
        %v562 = vld [vmem:[#allocation2 + $0xf0] sm:$0xff]
        %v563 = vld [vmem:[#allocation2 + $0xf8] sm:$0xff]
        %v564 = vld [vmem:[%s381] sm:$0xff]
        %v565 = vld [vmem:[%s381 + $0x8] sm:$0xff]
        %v566 = vld [vmem:[%s381 + $0x10] sm:$0xff]
        %v567 = vld [vmem:[%s381 + $0x18] sm:$0xff]
        %v568 = vld [vmem:[%s381 + $0x20] sm:$0xff]
        %v569 = vld [vmem:[%s381 + $0x28] sm:$0xff]
        %v570 = vld [vmem:[%s381 + $0x30] sm:$0xff]
        %v571 = vld [vmem:[%s381 + $0x38] sm:$0xff]
        %v572 = vld [vmem:[%s381 + $0x40] sm:$0xff]
        %v573 = vld [vmem:[%s381 + $0x48] sm:$0xff]
        %v574 = vld [vmem:[%s381 + $0x50] sm:$0xff]
        %v575 = vld [vmem:[%s381 + $0x58] sm:$0xff]
        %v576 = vld [vmem:[%s381 + $0x60] sm:$0xff]
        %v577 = vld [vmem:[%s381 + $0x68] sm:$0xff]
        %v578 = vld [vmem:[%s381 + $0x70] sm:$0xff]
        %v579 = vld [vmem:[%s381 + $0x78] sm:$0xff]
        %v580 = vld [vmem:[%s381 + $0x80] sm:$0xff]
        %v581 = vld [vmem:[%s381 + $0x88] sm:$0xff]
        %v582 = vld [vmem:[%s381 + $0x90] sm:$0xff]
        %v583 = vld [vmem:[%s381 + $0x98] sm:$0xff]
        %v584 = vld [vmem:[%s381 + $0xa0] sm:$0xff]
        %v585 = vld [vmem:[%s381 + $0xa8] sm:$0xff]
        %v586 = vld [vmem:[%s381 + $0xb0] sm:$0xff]
        %v587 = vld [vmem:[%s381 + $0xb8] sm:$0xff]
        %v588 = vld [vmem:[%s381 + $0xc0] sm:$0xff]
        %v589 = vld [vmem:[%s381 + $0xc8] sm:$0xff]
        %v590 = vld [vmem:[%s381 + $0xd0] sm:$0xff]
        %v591 = vld [vmem:[%s381 + $0xd8] sm:$0xff]
        %v592 = vld [vmem:[%s381 + $0xe0] sm:$0xff]
        %v593 = vld [vmem:[%s381 + $0xe8] sm:$0xff]
        %v594 = vld [vmem:[%s381 + $0xf0] sm:$0xff]
        %v595 = vld [vmem:[%s381 + $0xf8] sm:$0xff]
        %v596 = vld [vmem:[%s390] sm:$0x3]
        %v598 = vlaneseq
        %v599 = vshrl.u32 %v598, 7
        %v600 = vsub.s32 0, %v599
        %v601 = vrot.slane %v596, %v600
        %v602 = vlaneseq
        %v603 = vshrl.u32 %v602, 7
        %v604 = vsub.s32 1, %v603
        %v605 = vrot.slane %v596, %v604
        %v640 = vunpack.c.l.b16 %v532
        %v641 = vunpack.c.h.b16 %v532
        %v642 = vunpack.c.l.b16 %v533
        %v643 = vunpack.c.h.b16 %v533
        %v644 = vunpack.c.l.b16 %v534
        %v645 = vunpack.c.h.b16 %v534
        %v646 = vunpack.c.l.b16 %v535
        %v647 = vunpack.c.h.b16 %v535
        %v648 = vunpack.c.l.b16 %v536
        %v649 = vunpack.c.h.b16 %v536
        %v650 = vunpack.c.l.b16 %v537
        %v651 = vunpack.c.h.b16 %v537
        %v652 = vunpack.c.l.b16 %v538
        %v653 = vunpack.c.h.b16 %v538
        %v654 = vunpack.c.l.b16 %v539
        %v655 = vunpack.c.h.b16 %v539
        %v656 = vunpack.c.l.b16 %v540
        %v657 = vunpack.c.h.b16 %v540
        %v658 = vunpack.c.l.b16 %v541
        %v659 = vunpack.c.h.b16 %v541
        %v660 = vunpack.c.l.b16 %v542
        %v661 = vunpack.c.h.b16 %v542
        %v662 = vunpack.c.l.b16 %v543
        %v663 = vunpack.c.h.b16 %v543
        %v664 = vunpack.c.l.b16 %v544
        %v665 = vunpack.c.h.b16 %v544
        %v666 = vunpack.c.l.b16 %v545
        %v667 = vunpack.c.h.b16 %v545
        %v668 = vunpack.c.l.b16 %v546
        %v669 = vunpack.c.h.b16 %v546
        %v670 = vunpack.c.l.b16 %v547
        %v671 = vunpack.c.h.b16 %v547
        %v672 = vunpack.c.l.b16 %v548
        %v673 = vunpack.c.h.b16 %v548
        %v674 = vunpack.c.l.b16 %v549
        %v675 = vunpack.c.h.b16 %v549
        %v676 = vunpack.c.l.b16 %v550
        %v677 = vunpack.c.h.b16 %v550
        %v678 = vunpack.c.l.b16 %v551
        %v679 = vunpack.c.h.b16 %v551
        %v680 = vunpack.c.l.b16 %v552
        %v681 = vunpack.c.h.b16 %v552
        %v682 = vunpack.c.l.b16 %v553
        %v683 = vunpack.c.h.b16 %v553
        %v684 = vunpack.c.l.b16 %v554
        %v685 = vunpack.c.h.b16 %v554
        %v686 = vunpack.c.l.b16 %v555
        %v687 = vunpack.c.h.b16 %v555
        %v688 = vunpack.c.l.b16 %v556
        %v689 = vunpack.c.h.b16 %v556
        %v690 = vunpack.c.l.b16 %v557
        %v691 = vunpack.c.h.b16 %v557
        %v692 = vunpack.c.l.b16 %v558
        %v693 = vunpack.c.h.b16 %v558
        %v694 = vunpack.c.l.b16 %v559
        %v695 = vunpack.c.h.b16 %v559
        %v696 = vunpack.c.l.b16 %v560
        %v697 = vunpack.c.h.b16 %v560
        %v698 = vunpack.c.l.b16 %v561
        %v699 = vunpack.c.h.b16 %v561
        %v700 = vunpack.c.l.b16 %v562
        %v701 = vunpack.c.h.b16 %v562
        %v702 = vunpack.c.l.b16 %v563
        %v703 = vunpack.c.h.b16 %v563
        %v704 = vpack.c.b16 %v642, %v640
        %v705 = vpack.c.b16 %v643, %v641
        %v706 = vpack.c.b16 %v646, %v644
        %v707 = vpack.c.b16 %v647, %v645
        %v708 = vpack.c.b16 %v650, %v648
        %v709 = vpack.c.b16 %v651, %v649
        %v710 = vpack.c.b16 %v654, %v652
        %v711 = vpack.c.b16 %v655, %v653
        %v712 = vpack.c.b16 %v658, %v656
        %v713 = vpack.c.b16 %v659, %v657
        %v714 = vpack.c.b16 %v662, %v660
        %v715 = vpack.c.b16 %v663, %v661
        %v716 = vpack.c.b16 %v666, %v664
        %v717 = vpack.c.b16 %v667, %v665
        %v718 = vpack.c.b16 %v670, %v668
        %v719 = vpack.c.b16 %v671, %v669
        %v720 = vpack.c.b16 %v674, %v672
        %v721 = vpack.c.b16 %v675, %v673
        %v722 = vpack.c.b16 %v678, %v676
        %v723 = vpack.c.b16 %v679, %v677
        %v724 = vpack.c.b16 %v682, %v680
        %v725 = vpack.c.b16 %v683, %v681
        %v726 = vpack.c.b16 %v686, %v684
        %v727 = vpack.c.b16 %v687, %v685
        %v728 = vpack.c.b16 %v690, %v688
        %v729 = vpack.c.b16 %v691, %v689
        %v730 = vpack.c.b16 %v694, %v692
        %v731 = vpack.c.b16 %v695, %v693
        %v732 = vpack.c.b16 %v698, %v696
        %v733 = vpack.c.b16 %v699, %v697
        %v734 = vpack.c.b16 %v702, %v700
        %v735 = vpack.c.b16 %v703, %v701
        %v800 = vunpack.c.l.b16 %v564
        %v801 = vunpack.c.h.b16 %v564
        %v802 = vunpack.c.l.b16 %v565
        %v803 = vunpack.c.h.b16 %v565
        %v804 = vunpack.c.l.b16 %v566
        %v805 = vunpack.c.h.b16 %v566
        %v806 = vunpack.c.l.b16 %v567
        %v807 = vunpack.c.h.b16 %v567
        %v808 = vunpack.c.l.b16 %v568
        %v809 = vunpack.c.h.b16 %v568
        %v810 = vunpack.c.l.b16 %v569
        %v811 = vunpack.c.h.b16 %v569
        %v812 = vunpack.c.l.b16 %v570
        %v813 = vunpack.c.h.b16 %v570
        %v814 = vunpack.c.l.b16 %v571
        %v815 = vunpack.c.h.b16 %v571
        %v816 = vunpack.c.l.b16 %v572
        %v817 = vunpack.c.h.b16 %v572
        %v818 = vunpack.c.l.b16 %v573
        %v819 = vunpack.c.h.b16 %v573
        %v820 = vunpack.c.l.b16 %v574
        %v821 = vunpack.c.h.b16 %v574
        %v822 = vunpack.c.l.b16 %v575
        %v823 = vunpack.c.h.b16 %v575
        %v824 = vunpack.c.l.b16 %v576
        %v825 = vunpack.c.h.b16 %v576
        %v826 = vunpack.c.l.b16 %v577
        %v827 = vunpack.c.h.b16 %v577
        %v828 = vunpack.c.l.b16 %v578
        %v829 = vunpack.c.h.b16 %v578
        %v830 = vunpack.c.l.b16 %v579
        %v831 = vunpack.c.h.b16 %v579
        %v832 = vunpack.c.l.b16 %v580
        %v833 = vunpack.c.h.b16 %v580
        %v834 = vunpack.c.l.b16 %v581
        %v835 = vunpack.c.h.b16 %v581
        %v836 = vunpack.c.l.b16 %v582
        %v837 = vunpack.c.h.b16 %v582
        %v838 = vunpack.c.l.b16 %v583
        %v839 = vunpack.c.h.b16 %v583
        %v840 = vunpack.c.l.b16 %v584
        %v841 = vunpack.c.h.b16 %v584
        %v842 = vunpack.c.l.b16 %v585
        %v843 = vunpack.c.h.b16 %v585
        %v844 = vunpack.c.l.b16 %v586
        %v845 = vunpack.c.h.b16 %v586
        %v846 = vunpack.c.l.b16 %v587
        %v847 = vunpack.c.h.b16 %v587
        %v848 = vunpack.c.l.b16 %v588
        %v849 = vunpack.c.h.b16 %v588
        %v850 = vunpack.c.l.b16 %v589
        %v851 = vunpack.c.h.b16 %v589
        %v852 = vunpack.c.l.b16 %v590
        %v853 = vunpack.c.h.b16 %v590
        %v854 = vunpack.c.l.b16 %v591
        %v855 = vunpack.c.h.b16 %v591
        %v856 = vunpack.c.l.b16 %v592
        %v857 = vunpack.c.h.b16 %v592
        %v858 = vunpack.c.l.b16 %v593
        %v859 = vunpack.c.h.b16 %v593
        %v860 = vunpack.c.l.b16 %v594
        %v861 = vunpack.c.h.b16 %v594
        %v862 = vunpack.c.l.b16 %v595
        %v863 = vunpack.c.h.b16 %v595
        %v864 = vpack.c.b16 %v802, %v800
        %v865 = vpack.c.b16 %v803, %v801
        %v866 = vpack.c.b16 %v806, %v804
        %v867 = vpack.c.b16 %v807, %v805
        %v868 = vpack.c.b16 %v810, %v808
        %v869 = vpack.c.b16 %v811, %v809
        %v870 = vpack.c.b16 %v814, %v812
        %v871 = vpack.c.b16 %v815, %v813
        %v872 = vpack.c.b16 %v818, %v816
        %v873 = vpack.c.b16 %v819, %v817
        %v874 = vpack.c.b16 %v822, %v820
        %v875 = vpack.c.b16 %v823, %v821
        %v876 = vpack.c.b16 %v826, %v824
        %v877 = vpack.c.b16 %v827, %v825
        %v878 = vpack.c.b16 %v830, %v828
        %v879 = vpack.c.b16 %v831, %v829
        %v880 = vpack.c.b16 %v834, %v832
        %v881 = vpack.c.b16 %v835, %v833
        %v882 = vpack.c.b16 %v838, %v836
        %v883 = vpack.c.b16 %v839, %v837
        %v884 = vpack.c.b16 %v842, %v840
        %v885 = vpack.c.b16 %v843, %v841
        %v886 = vpack.c.b16 %v846, %v844
        %v887 = vpack.c.b16 %v847, %v845
        %v888 = vpack.c.b16 %v850, %v848
        %v889 = vpack.c.b16 %v851, %v849
        %v890 = vpack.c.b16 %v854, %v852
        %v891 = vpack.c.b16 %v855, %v853
        %v892 = vpack.c.b16 %v858, %v856
        %v893 = vpack.c.b16 %v859, %v857
        %v894 = vpack.c.b16 %v862, %v860
        %v895 = vpack.c.b16 %v863, %v861
        %928 = vmatprep.subr.bf16.mxu0 %v879
        %929 = vmatpush1.bf16.msra.mxu0 %v878
        %930 = vmatprep.subr.bf16.mxu0 %v877
        %931 = vmatpush1.bf16.msra.mxu0 %v876
        %932 = vmatprep.subr.bf16.mxu0 %v875
        %933 = vmatpush1.bf16.msra.mxu0 %v874
        %934 = vmatprep.subr.bf16.mxu0 %v873
        %935 = vmatpush1.bf16.msra.mxu0 %v872
        %936 = vmatprep.subr.bf16.mxu0 %v871
        %937 = vmatpush1.bf16.msra.mxu0 %v870
        %938 = vmatprep.subr.bf16.mxu0 %v869
        %939 = vmatpush1.bf16.msra.mxu0 %v868
        %940 = vmatprep.subr.bf16.mxu0 %v867
        %941 = vmatpush1.bf16.msra.mxu0 %v866
        %942 = vmatprep.subr.bf16.mxu0 %v865
        %943 = vmatpush1.bf16.msra.mxu0 %v864
        %944 = vmatprep.subr.bf16.mxu0 %v895
        %945 = vmatpush2.bf16.msra.mxu0 %v894
        %946 = vmatprep.subr.bf16.mxu0 %v893
        %947 = vmatpush2.bf16.msra.mxu0 %v892
        %948 = vmatprep.subr.bf16.mxu0 %v891
        %949 = vmatpush2.bf16.msra.mxu0 %v890
        %950 = vmatprep.subr.bf16.mxu0 %v889
        %951 = vmatpush2.bf16.msra.mxu0 %v888
        %952 = vmatprep.subr.bf16.mxu0 %v887
        %953 = vmatpush2.bf16.msra.mxu0 %v886
        %954 = vmatprep.subr.bf16.mxu0 %v885
        %955 = vmatpush2.bf16.msra.mxu0 %v884
        %956 = vmatprep.subr.bf16.mxu0 %v883
        %957 = vmatpush2.bf16.msra.mxu0 %v882
        %958 = vmatprep.subr.bf16.mxu0 %v881
        %959 = vmatpush2.bf16.msra.mxu0 %v880
        %960 = vmatprep.mubr.bf16.mxu0 %v705
        %961 = vmatmul.mubr.bf16.gmra.mxu0 %v704
        %v962 = vpop.f32.mrf.mxu0
        %v963 = vadd.f32 %v601, %v962
        %v964 = vpop.f32.mrf.mxu0
        %v965 = vadd.f32 %v605, %v964
        %v966 = vpop.f32.mrf.mxu0
        %v967 = vadd.f32 %v601, %v966
        %v968 = vpop.f32.mrf.mxu0
        %v969 = vadd.f32 %v605, %v968
        %970 = vmatprep.mubr.bf16.mxu0 %v707
        %971 = vmatmul.mubr.bf16.gmra.mxu0 %v706
        %v972 = vpop.f32.mrf.mxu0
        %v973 = vadd.f32 %v601, %v972
        %v974 = vpop.f32.mrf.mxu0
        %v975 = vadd.f32 %v605, %v974
        %v976 = vpop.f32.mrf.mxu0
        %v977 = vadd.f32 %v601, %v976
        %v978 = vpop.f32.mrf.mxu0
        %v979 = vadd.f32 %v605, %v978
        %980 = vmatprep.mubr.bf16.mxu0 %v709
        %981 = vmatmul.mubr.bf16.gmra.mxu0 %v708
        %v982 = vpop.f32.mrf.mxu0
        %v983 = vadd.f32 %v601, %v982
        %v984 = vpop.f32.mrf.mxu0
        %v985 = vadd.f32 %v605, %v984
        %v986 = vpop.f32.mrf.mxu0
        %v987 = vadd.f32 %v601, %v986
        %v988 = vpop.f32.mrf.mxu0
        %v989 = vadd.f32 %v605, %v988
        %990 = vmatprep.mubr.bf16.mxu0 %v711
        %991 = vmatmul.mubr.bf16.gmra.mxu0 %v710
        %v992 = vpop.f32.mrf.mxu0
        %v993 = vadd.f32 %v601, %v992
        %v994 = vpop.f32.mrf.mxu0
        %v995 = vadd.f32 %v605, %v994
        %v996 = vpop.f32.mrf.mxu0
        %v997 = vadd.f32 %v601, %v996
        %v998 = vpop.f32.mrf.mxu0
        %v999 = vadd.f32 %v605, %v998
        %1000 = vmatprep.mubr.bf16.mxu0 %v713
        %1001 = vmatmul.mubr.bf16.gmra.mxu0 %v712
        %v1002 = vpop.f32.mrf.mxu0
        %v1003 = vadd.f32 %v601, %v1002
        %v1004 = vpop.f32.mrf.mxu0
        %v1005 = vadd.f32 %v605, %v1004
        %v1006 = vpop.f32.mrf.mxu0
        %v1007 = vadd.f32 %v601, %v1006
        %v1008 = vpop.f32.mrf.mxu0
        %v1009 = vadd.f32 %v605, %v1008
        %1010 = vmatprep.mubr.bf16.mxu0 %v715
        %1011 = vmatmul.mubr.bf16.gmra.mxu0 %v714
        %v1012 = vpop.f32.mrf.mxu0
        %v1013 = vadd.f32 %v601, %v1012
        %v1014 = vpop.f32.mrf.mxu0
        %v1015 = vadd.f32 %v605, %v1014
        %v1016 = vpop.f32.mrf.mxu0
        %v1017 = vadd.f32 %v601, %v1016
        %v1018 = vpop.f32.mrf.mxu0
        %v1019 = vadd.f32 %v605, %v1018
        %1020 = vmatprep.mubr.bf16.mxu0 %v717
        %1021 = vmatmul.mubr.bf16.gmra.mxu0 %v716
        %v1022 = vpop.f32.mrf.mxu0
        %v1023 = vadd.f32 %v601, %v1022
        %v1024 = vpop.f32.mrf.mxu0
        %v1025 = vadd.f32 %v605, %v1024
        %v1026 = vpop.f32.mrf.mxu0
        %v1027 = vadd.f32 %v601, %v1026
        %v1028 = vpop.f32.mrf.mxu0
        %v1029 = vadd.f32 %v605, %v1028
        %1030 = vmatprep.mubr.bf16.mxu0 %v719
        %1031 = vmatmul.mubr.bf16.gmra.mxu0 %v718
        %v1032 = vpop.f32.mrf.mxu0
        %v1033 = vadd.f32 %v601, %v1032
        %v1034 = vpop.f32.mrf.mxu0
        %v1035 = vadd.f32 %v605, %v1034
        %v1036 = vpop.f32.mrf.mxu0
        %v1037 = vadd.f32 %v601, %v1036
        %v1038 = vpop.f32.mrf.mxu0
        %v1039 = vadd.f32 %v605, %v1038
        %1040 = vmatprep.mubr.bf16.mxu0 %v721
        %1041 = vmatmul.mubr.bf16.gmra.mxu0 %v720
        %v1042 = vpop.f32.mrf.mxu0
        %v1043 = vadd.f32 %v601, %v1042
        %v1044 = vpop.f32.mrf.mxu0
        %v1045 = vadd.f32 %v605, %v1044
        %v1046 = vpop.f32.mrf.mxu0
        %v1047 = vadd.f32 %v601, %v1046
        %v1048 = vpop.f32.mrf.mxu0
        %v1049 = vadd.f32 %v605, %v1048
        %1050 = vmatprep.mubr.bf16.mxu0 %v723
        %1051 = vmatmul.mubr.bf16.gmra.mxu0 %v722
        %v1052 = vpop.f32.mrf.mxu0
        %v1053 = vadd.f32 %v601, %v1052
        %v1054 = vpop.f32.mrf.mxu0
        %v1055 = vadd.f32 %v605, %v1054
        %v1056 = vpop.f32.mrf.mxu0
        %v1057 = vadd.f32 %v601, %v1056
        %v1058 = vpop.f32.mrf.mxu0
        %v1059 = vadd.f32 %v605, %v1058
        %1060 = vmatprep.mubr.bf16.mxu0 %v725
        %1061 = vmatmul.mubr.bf16.gmra.mxu0 %v724
        %v1062 = vpop.f32.mrf.mxu0
        %v1063 = vadd.f32 %v601, %v1062
        %v1064 = vpop.f32.mrf.mxu0
        %v1065 = vadd.f32 %v605, %v1064
        %v1066 = vpop.f32.mrf.mxu0
        %v1067 = vadd.f32 %v601, %v1066
        %v1068 = vpop.f32.mrf.mxu0
        %v1069 = vadd.f32 %v605, %v1068
        %1070 = vmatprep.mubr.bf16.mxu0 %v727
        %1071 = vmatmul.mubr.bf16.gmra.mxu0 %v726
        %v1072 = vpop.f32.mrf.mxu0
        %v1073 = vadd.f32 %v601, %v1072
        %v1074 = vpop.f32.mrf.mxu0
        %v1075 = vadd.f32 %v605, %v1074
        %v1076 = vpop.f32.mrf.mxu0
        %v1077 = vadd.f32 %v601, %v1076
        %v1078 = vpop.f32.mrf.mxu0
        %v1079 = vadd.f32 %v605, %v1078
        %1080 = vmatprep.mubr.bf16.mxu0 %v729
        %1081 = vmatmul.mubr.bf16.gmra.mxu0 %v728
        %v1082 = vpop.f32.mrf.mxu0
        %v1083 = vadd.f32 %v601, %v1082
        %v1084 = vpop.f32.mrf.mxu0
        %v1085 = vadd.f32 %v605, %v1084
        %v1086 = vpop.f32.mrf.mxu0
        %v1087 = vadd.f32 %v601, %v1086
        %v1088 = vpop.f32.mrf.mxu0
        %v1089 = vadd.f32 %v605, %v1088
        %1090 = vmatprep.mubr.bf16.mxu0 %v731
        %1091 = vmatmul.mubr.bf16.gmra.mxu0 %v730
        %v1092 = vpop.f32.mrf.mxu0
        %v1093 = vadd.f32 %v601, %v1092
        %v1094 = vpop.f32.mrf.mxu0
        %v1095 = vadd.f32 %v605, %v1094
        %v1096 = vpop.f32.mrf.mxu0
        %v1097 = vadd.f32 %v601, %v1096
        %v1098 = vpop.f32.mrf.mxu0
        %v1099 = vadd.f32 %v605, %v1098
        %1100 = vmatprep.mubr.bf16.mxu0 %v733
        %1101 = vmatmul.mubr.bf16.gmra.mxu0 %v732
        %v1102 = vpop.f32.mrf.mxu0
        %v1103 = vadd.f32 %v601, %v1102
        %v1104 = vpop.f32.mrf.mxu0
        %v1105 = vadd.f32 %v605, %v1104
        %v1106 = vpop.f32.mrf.mxu0
        %v1107 = vadd.f32 %v601, %v1106
        %v1108 = vpop.f32.mrf.mxu0
        %v1109 = vadd.f32 %v605, %v1108
        %1110 = vmatprep.mubr.bf16.mxu0 %v735
        %1111 = vmatmul.mubr.bf16.gmra.mxu0 %v734
        %v1112 = vpop.f32.mrf.mxu0
        %v1113 = vadd.f32 %v601, %v1112
        %v1114 = vpop.f32.mrf.mxu0
        %v1115 = vadd.f32 %v605, %v1114
        %v1116 = vpop.f32.mrf.mxu0
        %v1117 = vadd.f32 %v601, %v1116
        %v1118 = vpop.f32.mrf.mxu0
        %v1119 = vadd.f32 %v605, %v1118
        %1120 = vdwg.mxu0
        %v1121 = vld [vmem:[%s399] sm:$0xff]
        %v1122 = vld [vmem:[%s399 + $0x8] sm:$0xff]
        %v1123 = vld [vmem:[%s399 + $0x10] sm:$0xff]
        %v1124 = vld [vmem:[%s399 + $0x18] sm:$0xff]
        %v1125 = vld [vmem:[%s399 + $0x20] sm:$0xff]
        %v1126 = vld [vmem:[%s399 + $0x28] sm:$0xff]
        %v1127 = vld [vmem:[%s399 + $0x30] sm:$0xff]
        %v1128 = vld [vmem:[%s399 + $0x38] sm:$0xff]
        %v1129 = vld [vmem:[%s399 + $0x40] sm:$0xff]
        %v1130 = vld [vmem:[%s399 + $0x48] sm:$0xff]
        %v1131 = vld [vmem:[%s399 + $0x50] sm:$0xff]
        %v1132 = vld [vmem:[%s399 + $0x58] sm:$0xff]
        %v1133 = vld [vmem:[%s399 + $0x60] sm:$0xff]
        %v1134 = vld [vmem:[%s399 + $0x68] sm:$0xff]
        %v1135 = vld [vmem:[%s399 + $0x70] sm:$0xff]
        %v1136 = vld [vmem:[%s399 + $0x78] sm:$0xff]
        %v1137 = vld [vmem:[%s399 + $0x80] sm:$0xff]
        %v1138 = vld [vmem:[%s399 + $0x88] sm:$0xff]
        %v1139 = vld [vmem:[%s399 + $0x90] sm:$0xff]
        %v1140 = vld [vmem:[%s399 + $0x98] sm:$0xff]
        %v1141 = vld [vmem:[%s399 + $0xa0] sm:$0xff]
        %v1142 = vld [vmem:[%s399 + $0xa8] sm:$0xff]
        %v1143 = vld [vmem:[%s399 + $0xb0] sm:$0xff]
        %v1144 = vld [vmem:[%s399 + $0xb8] sm:$0xff]
        %v1145 = vld [vmem:[%s399 + $0xc0] sm:$0xff]
        %v1146 = vld [vmem:[%s399 + $0xc8] sm:$0xff]
        %v1147 = vld [vmem:[%s399 + $0xd0] sm:$0xff]
        %v1148 = vld [vmem:[%s399 + $0xd8] sm:$0xff]
        %v1149 = vld [vmem:[%s399 + $0xe0] sm:$0xff]
        %v1150 = vld [vmem:[%s399 + $0xe8] sm:$0xff]
        %v1151 = vld [vmem:[%s399 + $0xf0] sm:$0xff]
        %v1152 = vld [vmem:[%s399 + $0xf8] sm:$0xff]
        %v1153 = vld [vmem:[%s460] sm:$0x3]
        %v1155 = vlaneseq
        %v1156 = vshrl.u32 %v1155, 7
        %v1157 = vsub.s32 0, %v1156
        %v1158 = vrot.slane %v1153, %v1157
        %v1159 = vlaneseq
        %v1160 = vshrl.u32 %v1159, 7
        %v1161 = vsub.s32 1, %v1160
        %v1162 = vrot.slane %v1153, %v1161
        %v1197 = vunpack.c.l.b16 %v1121
        %v1198 = vunpack.c.h.b16 %v1121
        %v1199 = vunpack.c.l.b16 %v1122
        %v1200 = vunpack.c.h.b16 %v1122
        %v1201 = vunpack.c.l.b16 %v1123
        %v1202 = vunpack.c.h.b16 %v1123
        %v1203 = vunpack.c.l.b16 %v1124
        %v1204 = vunpack.c.h.b16 %v1124
        %v1205 = vunpack.c.l.b16 %v1125
        %v1206 = vunpack.c.h.b16 %v1125
        %v1207 = vunpack.c.l.b16 %v1126
        %v1208 = vunpack.c.h.b16 %v1126
        %v1209 = vunpack.c.l.b16 %v1127
        %v1210 = vunpack.c.h.b16 %v1127
        %v1211 = vunpack.c.l.b16 %v1128
        %v1212 = vunpack.c.h.b16 %v1128
        %v1213 = vunpack.c.l.b16 %v1129
        %v1214 = vunpack.c.h.b16 %v1129
        %v1215 = vunpack.c.l.b16 %v1130
        %v1216 = vunpack.c.h.b16 %v1130
        %v1217 = vunpack.c.l.b16 %v1131
        %v1218 = vunpack.c.h.b16 %v1131
        %v1219 = vunpack.c.l.b16 %v1132
        %v1220 = vunpack.c.h.b16 %v1132
        %v1221 = vunpack.c.l.b16 %v1133
        %v1222 = vunpack.c.h.b16 %v1133
        %v1223 = vunpack.c.l.b16 %v1134
        %v1224 = vunpack.c.h.b16 %v1134
        %v1225 = vunpack.c.l.b16 %v1135
        %v1226 = vunpack.c.h.b16 %v1135
        %v1227 = vunpack.c.l.b16 %v1136
        %v1228 = vunpack.c.h.b16 %v1136
        %v1229 = vunpack.c.l.b16 %v1137
        %v1230 = vunpack.c.h.b16 %v1137
        %v1231 = vunpack.c.l.b16 %v1138
        %v1232 = vunpack.c.h.b16 %v1138
        %v1233 = vunpack.c.l.b16 %v1139
        %v1234 = vunpack.c.h.b16 %v1139
        %v1235 = vunpack.c.l.b16 %v1140
        %v1236 = vunpack.c.h.b16 %v1140
        %v1237 = vunpack.c.l.b16 %v1141
        %v1238 = vunpack.c.h.b16 %v1141
        %v1239 = vunpack.c.l.b16 %v1142
        %v1240 = vunpack.c.h.b16 %v1142
        %v1241 = vunpack.c.l.b16 %v1143
        %v1242 = vunpack.c.h.b16 %v1143
        %v1243 = vunpack.c.l.b16 %v1144
        %v1244 = vunpack.c.h.b16 %v1144
        %v1245 = vunpack.c.l.b16 %v1145
        %v1246 = vunpack.c.h.b16 %v1145
        %v1247 = vunpack.c.l.b16 %v1146
        %v1248 = vunpack.c.h.b16 %v1146
        %v1249 = vunpack.c.l.b16 %v1147
        %v1250 = vunpack.c.h.b16 %v1147
        %v1251 = vunpack.c.l.b16 %v1148
        %v1252 = vunpack.c.h.b16 %v1148
        %v1253 = vunpack.c.l.b16 %v1149
        %v1254 = vunpack.c.h.b16 %v1149
        %v1255 = vunpack.c.l.b16 %v1150
        %v1256 = vunpack.c.h.b16 %v1150
        %v1257 = vunpack.c.l.b16 %v1151
        %v1258 = vunpack.c.h.b16 %v1151
        %v1259 = vunpack.c.l.b16 %v1152
        %v1260 = vunpack.c.h.b16 %v1152
        %v1261 = vpack.c.b16 %v1199, %v1197
        %v1262 = vpack.c.b16 %v1200, %v1198
        %v1263 = vpack.c.b16 %v1203, %v1201
        %v1264 = vpack.c.b16 %v1204, %v1202
        %v1265 = vpack.c.b16 %v1207, %v1205
        %v1266 = vpack.c.b16 %v1208, %v1206
        %v1267 = vpack.c.b16 %v1211, %v1209
        %v1268 = vpack.c.b16 %v1212, %v1210
        %v1269 = vpack.c.b16 %v1215, %v1213
        %v1270 = vpack.c.b16 %v1216, %v1214
        %v1271 = vpack.c.b16 %v1219, %v1217
        %v1272 = vpack.c.b16 %v1220, %v1218
        %v1273 = vpack.c.b16 %v1223, %v1221
        %v1274 = vpack.c.b16 %v1224, %v1222
        %v1275 = vpack.c.b16 %v1227, %v1225
        %v1276 = vpack.c.b16 %v1228, %v1226
        %v1277 = vpack.c.b16 %v1231, %v1229
        %v1278 = vpack.c.b16 %v1232, %v1230
        %v1279 = vpack.c.b16 %v1235, %v1233
        %v1280 = vpack.c.b16 %v1236, %v1234
        %v1281 = vpack.c.b16 %v1239, %v1237
        %v1282 = vpack.c.b16 %v1240, %v1238
        %v1283 = vpack.c.b16 %v1243, %v1241
        %v1284 = vpack.c.b16 %v1244, %v1242
        %v1285 = vpack.c.b16 %v1247, %v1245
        %v1286 = vpack.c.b16 %v1248, %v1246
        %v1287 = vpack.c.b16 %v1251, %v1249
        %v1288 = vpack.c.b16 %v1252, %v1250
        %v1289 = vpack.c.b16 %v1255, %v1253
        %v1290 = vpack.c.b16 %v1256, %v1254
        %v1291 = vpack.c.b16 %v1259, %v1257
        %v1292 = vpack.c.b16 %v1260, %v1258
        %1325 = vmatprep.subr.bf16.mxu0 %v1276
        %1326 = vmatpush1.bf16.msra.mxu0 %v1275
        %1327 = vmatprep.subr.bf16.mxu0 %v1274
        %1328 = vmatpush1.bf16.msra.mxu0 %v1273
        %1329 = vmatprep.subr.bf16.mxu0 %v1272
        %1330 = vmatpush1.bf16.msra.mxu0 %v1271
        %1331 = vmatprep.subr.bf16.mxu0 %v1270
        %1332 = vmatpush1.bf16.msra.mxu0 %v1269
        %1333 = vmatprep.subr.bf16.mxu0 %v1268
        %1334 = vmatpush1.bf16.msra.mxu0 %v1267
        %1335 = vmatprep.subr.bf16.mxu0 %v1266
        %1336 = vmatpush1.bf16.msra.mxu0 %v1265
        %1337 = vmatprep.subr.bf16.mxu0 %v1264
        %1338 = vmatpush1.bf16.msra.mxu0 %v1263
        %1339 = vmatprep.subr.bf16.mxu0 %v1262
        %1340 = vmatpush1.bf16.msra.mxu0 %v1261
        %1341 = vmatprep.subr.bf16.mxu0 %v1292
        %1342 = vmatpush2.bf16.msra.mxu0 %v1291
        %1343 = vmatprep.subr.bf16.mxu0 %v1290
        %1344 = vmatpush2.bf16.msra.mxu0 %v1289
        %1345 = vmatprep.subr.bf16.mxu0 %v1288
        %1346 = vmatpush2.bf16.msra.mxu0 %v1287
        %1347 = vmatprep.subr.bf16.mxu0 %v1286
        %1348 = vmatpush2.bf16.msra.mxu0 %v1285
        %1349 = vmatprep.subr.bf16.mxu0 %v1284
        %1350 = vmatpush2.bf16.msra.mxu0 %v1283
        %1351 = vmatprep.subr.bf16.mxu0 %v1282
        %1352 = vmatpush2.bf16.msra.mxu0 %v1281
        %1353 = vmatprep.subr.bf16.mxu0 %v1280
        %1354 = vmatpush2.bf16.msra.mxu0 %v1279
        %1355 = vmatprep.subr.bf16.mxu0 %v1278
        %1356 = vmatpush2.bf16.msra.mxu0 %v1277
        %1357 = vmatprep.mubr.bf16.mxu0 %v705
        %1358 = vmatmul.mubr.bf16.gmra.mxu0 %v704
        %v1359 = vpop.f32.mrf.mxu0
        %v1360 = vadd.f32 %v1158, %v1359
        %v1361 = vpop.f32.mrf.mxu0
        %v1362 = vadd.f32 %v1162, %v1361
        %v1363 = vpop.f32.mrf.mxu0
        %v1364 = vadd.f32 %v1158, %v1363
        %v1365 = vpop.f32.mrf.mxu0
        %v1366 = vadd.f32 %v1162, %v1365
        %1367 = vmatprep.mubr.bf16.mxu0 %v707
        %1368 = vmatmul.mubr.bf16.gmra.mxu0 %v706
        %v1369 = vpop.f32.mrf.mxu0
        %v1370 = vadd.f32 %v1158, %v1369
        %v1371 = vpop.f32.mrf.mxu0
        %v1372 = vadd.f32 %v1162, %v1371
        %v1373 = vpop.f32.mrf.mxu0
        %v1374 = vadd.f32 %v1158, %v1373
        %v1375 = vpop.f32.mrf.mxu0
        %v1376 = vadd.f32 %v1162, %v1375
        %1377 = vmatprep.mubr.bf16.mxu0 %v709
        %1378 = vmatmul.mubr.bf16.gmra.mxu0 %v708
        %v1379 = vpop.f32.mrf.mxu0
        %v1380 = vadd.f32 %v1158, %v1379
        %v1381 = vpop.f32.mrf.mxu0
        %v1382 = vadd.f32 %v1162, %v1381
        %v1383 = vpop.f32.mrf.mxu0
        %v1384 = vadd.f32 %v1158, %v1383
        %v1385 = vpop.f32.mrf.mxu0
        %v1386 = vadd.f32 %v1162, %v1385
        %1387 = vmatprep.mubr.bf16.mxu0 %v711
        %1388 = vmatmul.mubr.bf16.gmra.mxu0 %v710
        %v1389 = vpop.f32.mrf.mxu0
        %v1390 = vadd.f32 %v1158, %v1389
        %v1391 = vpop.f32.mrf.mxu0
        %v1392 = vadd.f32 %v1162, %v1391
        %v1393 = vpop.f32.mrf.mxu0
        %v1394 = vadd.f32 %v1158, %v1393
        %v1395 = vpop.f32.mrf.mxu0
        %v1396 = vadd.f32 %v1162, %v1395
        %1397 = vmatprep.mubr.bf16.mxu0 %v713
        %1398 = vmatmul.mubr.bf16.gmra.mxu0 %v712
        %v1399 = vpop.f32.mrf.mxu0
        %v1400 = vadd.f32 %v1158, %v1399
        %v1401 = vpop.f32.mrf.mxu0
        %v1402 = vadd.f32 %v1162, %v1401
        %v1403 = vpop.f32.mrf.mxu0
        %v1404 = vadd.f32 %v1158, %v1403
        %v1405 = vpop.f32.mrf.mxu0
        %v1406 = vadd.f32 %v1162, %v1405
        %1407 = vmatprep.mubr.bf16.mxu0 %v715
        %1408 = vmatmul.mubr.bf16.gmra.mxu0 %v714
        %v1409 = vpop.f32.mrf.mxu0
        %v1410 = vadd.f32 %v1158, %v1409
        %v1411 = vpop.f32.mrf.mxu0
        %v1412 = vadd.f32 %v1162, %v1411
        %v1413 = vpop.f32.mrf.mxu0
        %v1414 = vadd.f32 %v1158, %v1413
        %v1415 = vpop.f32.mrf.mxu0
        %v1416 = vadd.f32 %v1162, %v1415
        %1417 = vmatprep.mubr.bf16.mxu0 %v717
        %1418 = vmatmul.mubr.bf16.gmra.mxu0 %v716
        %v1419 = vpop.f32.mrf.mxu0
        %v1420 = vadd.f32 %v1158, %v1419
        %v1421 = vpop.f32.mrf.mxu0
        %v1422 = vadd.f32 %v1162, %v1421
        %v1423 = vpop.f32.mrf.mxu0
        %v1424 = vadd.f32 %v1158, %v1423
        %v1425 = vpop.f32.mrf.mxu0
        %v1426 = vadd.f32 %v1162, %v1425
        %1427 = vmatprep.mubr.bf16.mxu0 %v719
        %1428 = vmatmul.mubr.bf16.gmra.mxu0 %v718
        %v1429 = vpop.f32.mrf.mxu0
        %v1430 = vadd.f32 %v1158, %v1429
        %v1431 = vpop.f32.mrf.mxu0
        %v1432 = vadd.f32 %v1162, %v1431
        %v1433 = vpop.f32.mrf.mxu0
        %v1434 = vadd.f32 %v1158, %v1433
        %v1435 = vpop.f32.mrf.mxu0
        %v1436 = vadd.f32 %v1162, %v1435
        %1437 = vmatprep.mubr.bf16.mxu0 %v721
        %1438 = vmatmul.mubr.bf16.gmra.mxu0 %v720
        %v1439 = vpop.f32.mrf.mxu0
        %v1440 = vadd.f32 %v1158, %v1439
        %v1441 = vpop.f32.mrf.mxu0
        %v1442 = vadd.f32 %v1162, %v1441
        %v1443 = vpop.f32.mrf.mxu0
        %v1444 = vadd.f32 %v1158, %v1443
        %v1445 = vpop.f32.mrf.mxu0
        %v1446 = vadd.f32 %v1162, %v1445
        %1447 = vmatprep.mubr.bf16.mxu0 %v723
        %1448 = vmatmul.mubr.bf16.gmra.mxu0 %v722
        %v1449 = vpop.f32.mrf.mxu0
        %v1450 = vadd.f32 %v1158, %v1449
        %v1451 = vpop.f32.mrf.mxu0
        %v1452 = vadd.f32 %v1162, %v1451
        %v1453 = vpop.f32.mrf.mxu0
        %v1454 = vadd.f32 %v1158, %v1453
        %v1455 = vpop.f32.mrf.mxu0
        %v1456 = vadd.f32 %v1162, %v1455
        %1457 = vmatprep.mubr.bf16.mxu0 %v725
        %1458 = vmatmul.mubr.bf16.gmra.mxu0 %v724
        %v1459 = vpop.f32.mrf.mxu0
        %v1460 = vadd.f32 %v1158, %v1459
        %v1461 = vpop.f32.mrf.mxu0
        %v1462 = vadd.f32 %v1162, %v1461
        %v1463 = vpop.f32.mrf.mxu0
        %v1464 = vadd.f32 %v1158, %v1463
        %v1465 = vpop.f32.mrf.mxu0
        %v1466 = vadd.f32 %v1162, %v1465
        %1467 = vmatprep.mubr.bf16.mxu0 %v727
        %1468 = vmatmul.mubr.bf16.gmra.mxu0 %v726
        %v1469 = vpop.f32.mrf.mxu0
        %v1470 = vadd.f32 %v1158, %v1469
        %v1471 = vpop.f32.mrf.mxu0
        %v1472 = vadd.f32 %v1162, %v1471
        %v1473 = vpop.f32.mrf.mxu0
        %v1474 = vadd.f32 %v1158, %v1473
        %v1475 = vpop.f32.mrf.mxu0
        %v1476 = vadd.f32 %v1162, %v1475
        %1477 = vmatprep.mubr.bf16.mxu0 %v729
        %1478 = vmatmul.mubr.bf16.gmra.mxu0 %v728
        %v1479 = vpop.f32.mrf.mxu0
        %v1480 = vadd.f32 %v1158, %v1479
        %v1481 = vpop.f32.mrf.mxu0
        %v1482 = vadd.f32 %v1162, %v1481
        %v1483 = vpop.f32.mrf.mxu0
        %v1484 = vadd.f32 %v1158, %v1483
        %v1485 = vpop.f32.mrf.mxu0
        %v1486 = vadd.f32 %v1162, %v1485
        %1487 = vmatprep.mubr.bf16.mxu0 %v731
        %1488 = vmatmul.mubr.bf16.gmra.mxu0 %v730
        %v1489 = vpop.f32.mrf.mxu0
        %v1490 = vadd.f32 %v1158, %v1489
        %v1491 = vpop.f32.mrf.mxu0
        %v1492 = vadd.f32 %v1162, %v1491
        %v1493 = vpop.f32.mrf.mxu0
        %v1494 = vadd.f32 %v1158, %v1493
        %v1495 = vpop.f32.mrf.mxu0
        %v1496 = vadd.f32 %v1162, %v1495
        %1497 = vmatprep.mubr.bf16.mxu0 %v733
        %1498 = vmatmul.mubr.bf16.gmra.mxu0 %v732
        %v1499 = vpop.f32.mrf.mxu0
        %v1500 = vadd.f32 %v1158, %v1499
        %v1501 = vpop.f32.mrf.mxu0
        %v1502 = vadd.f32 %v1162, %v1501
        %v1503 = vpop.f32.mrf.mxu0
        %v1504 = vadd.f32 %v1158, %v1503
        %v1505 = vpop.f32.mrf.mxu0
        %v1506 = vadd.f32 %v1162, %v1505
        %1507 = vmatprep.mubr.bf16.mxu0 %v735
        %1508 = vmatmul.mubr.bf16.gmra.mxu0 %v734
        %v1509 = vpop.f32.mrf.mxu0
        %v1510 = vadd.f32 %v1158, %v1509
        %v1511 = vpop.f32.mrf.mxu0
        %v1512 = vadd.f32 %v1162, %v1511
        %v1513 = vpop.f32.mrf.mxu0
        %v1514 = vadd.f32 %v1158, %v1513
        %v1515 = vpop.f32.mrf.mxu0
        %v1516 = vadd.f32 %v1162, %v1515
        %1517 = vdwg.mxu0
        %v1518 = vxor.u32 %v1360, 2147483648
        %v1519 = vxor.u32 %v1362, 2147483648
        %v1520 = vxor.u32 %v1364, 2147483648
        %v1521 = vxor.u32 %v1366, 2147483648
        %v1522 = vxor.u32 %v1370, 2147483648
        %v1523 = vxor.u32 %v1372, 2147483648
        %v1524 = vxor.u32 %v1374, 2147483648
        %v1525 = vxor.u32 %v1376, 2147483648
        %v1526 = vxor.u32 %v1380, 2147483648
        %v1527 = vxor.u32 %v1382, 2147483648
        %v1528 = vxor.u32 %v1384, 2147483648
        %v1529 = vxor.u32 %v1386, 2147483648
        %v1530 = vxor.u32 %v1390, 2147483648
        %v1531 = vxor.u32 %v1392, 2147483648
        %v1532 = vxor.u32 %v1394, 2147483648
        %v1533 = vxor.u32 %v1396, 2147483648
        %v1534 = vxor.u32 %v1400, 2147483648
        %v1535 = vxor.u32 %v1402, 2147483648
        %v1536 = vxor.u32 %v1404, 2147483648
        %v1537 = vxor.u32 %v1406, 2147483648
        %v1538 = vxor.u32 %v1410, 2147483648
        %v1539 = vxor.u32 %v1412, 2147483648
        %v1540 = vxor.u32 %v1414, 2147483648
        %v1541 = vxor.u32 %v1416, 2147483648
        %v1542 = vxor.u32 %v1420, 2147483648
        %v1543 = vxor.u32 %v1422, 2147483648
        %v1544 = vxor.u32 %v1424, 2147483648
        %v1545 = vxor.u32 %v1426, 2147483648
        %v1546 = vxor.u32 %v1430, 2147483648
        %v1547 = vxor.u32 %v1432, 2147483648
        %v1548 = vxor.u32 %v1434, 2147483648
        %v1549 = vxor.u32 %v1436, 2147483648
        %v1550 = vxor.u32 %v1440, 2147483648
        %v1551 = vxor.u32 %v1442, 2147483648
        %v1552 = vxor.u32 %v1444, 2147483648
        %v1553 = vxor.u32 %v1446, 2147483648
        %v1554 = vxor.u32 %v1450, 2147483648
        %v1555 = vxor.u32 %v1452, 2147483648
        %v1556 = vxor.u32 %v1454, 2147483648
        %v1557 = vxor.u32 %v1456, 2147483648
        %v1558 = vxor.u32 %v1460, 2147483648
        %v1559 = vxor.u32 %v1462, 2147483648
        %v1560 = vxor.u32 %v1464, 2147483648
        %v1561 = vxor.u32 %v1466, 2147483648
        %v1562 = vxor.u32 %v1470, 2147483648
        %v1563 = vxor.u32 %v1472, 2147483648
        %v1564 = vxor.u32 %v1474, 2147483648
        %v1565 = vxor.u32 %v1476, 2147483648
        %v1566 = vxor.u32 %v1480, 2147483648
        %v1567 = vxor.u32 %v1482, 2147483648
        %v1568 = vxor.u32 %v1484, 2147483648
        %v1569 = vxor.u32 %v1486, 2147483648
        %v1570 = vxor.u32 %v1490, 2147483648
        %v1571 = vxor.u32 %v1492, 2147483648
        %v1572 = vxor.u32 %v1494, 2147483648
        %v1573 = vxor.u32 %v1496, 2147483648
        %v1574 = vxor.u32 %v1500, 2147483648
        %v1575 = vxor.u32 %v1502, 2147483648
        %v1576 = vxor.u32 %v1504, 2147483648
        %v1577 = vxor.u32 %v1506, 2147483648
        %v1578 = vxor.u32 %v1510, 2147483648
        %v1579 = vxor.u32 %v1512, 2147483648
        %v1580 = vxor.u32 %v1514, 2147483648
        %v1581 = vxor.u32 %v1516, 2147483648
        %v1582 = vmul.f32 %v1518, 1.442695
        %v1583 = vpow.pop %v1582
        %v1584 = vmul.f32 %v1519, 1.442695
        %v1585 = vpow.pop %v1584
        %v1586 = vmul.f32 %v1520, 1.442695
        %v1587 = vpow.pop %v1586
        %v1588 = vmul.f32 %v1521, 1.442695
        %v1589 = vpow.pop %v1588
        %v1590 = vmul.f32 %v1522, 1.442695
        %v1591 = vpow.pop %v1590
        %v1592 = vmul.f32 %v1523, 1.442695
        %v1593 = vpow.pop %v1592
        %v1594 = vmul.f32 %v1524, 1.442695
        %v1595 = vpow.pop %v1594
        %v1596 = vmul.f32 %v1525, 1.442695
        %v1597 = vpow.pop %v1596
        %v1598 = vmul.f32 %v1526, 1.442695
        %v1599 = vpow.pop %v1598
        %v1600 = vmul.f32 %v1527, 1.442695
        %v1601 = vpow.pop %v1600
        %v1602 = vmul.f32 %v1528, 1.442695
        %v1603 = vpow.pop %v1602
        %v1604 = vmul.f32 %v1529, 1.442695
        %v1605 = vpow.pop %v1604
        %v1606 = vmul.f32 %v1530, 1.442695
        %v1607 = vpow.pop %v1606
        %v1608 = vmul.f32 %v1531, 1.442695
        %v1609 = vpow.pop %v1608
        %v1610 = vmul.f32 %v1532, 1.442695
        %v1611 = vpow.pop %v1610
        %v1612 = vmul.f32 %v1533, 1.442695
        %v1613 = vpow.pop %v1612
        %v1614 = vmul.f32 %v1534, 1.442695
        %v1615 = vpow.pop %v1614
        %v1616 = vmul.f32 %v1535, 1.442695
        %v1617 = vpow.pop %v1616
        %v1618 = vmul.f32 %v1536, 1.442695
        %v1619 = vpow.pop %v1618
        %v1620 = vmul.f32 %v1537, 1.442695
        %v1621 = vpow.pop %v1620
        %v1622 = vmul.f32 %v1538, 1.442695
        %v1623 = vpow.pop %v1622
        %v1624 = vmul.f32 %v1539, 1.442695
        %v1625 = vpow.pop %v1624
        %v1626 = vmul.f32 %v1540, 1.442695
        %v1627 = vpow.pop %v1626
        %v1628 = vmul.f32 %v1541, 1.442695
        %v1629 = vpow.pop %v1628
        %v1630 = vmul.f32 %v1542, 1.442695
        %v1631 = vpow.pop %v1630
        %v1632 = vmul.f32 %v1543, 1.442695
        %v1633 = vpow.pop %v1632
        %v1634 = vmul.f32 %v1544, 1.442695
        %v1635 = vpow.pop %v1634
        %v1636 = vmul.f32 %v1545, 1.442695
        %v1637 = vpow.pop %v1636
        %v1638 = vmul.f32 %v1546, 1.442695
        %v1639 = vpow.pop %v1638
        %v1640 = vmul.f32 %v1547, 1.442695
        %v1641 = vpow.pop %v1640
        %v1642 = vmul.f32 %v1548, 1.442695
        %v1643 = vpow.pop %v1642
        %v1644 = vmul.f32 %v1549, 1.442695
        %v1645 = vpow.pop %v1644
        %v1646 = vmul.f32 %v1550, 1.442695
        %v1647 = vpow.pop %v1646
        %v1648 = vmul.f32 %v1551, 1.442695
        %v1649 = vpow.pop %v1648
        %v1650 = vmul.f32 %v1552, 1.442695
        %v1651 = vpow.pop %v1650
        %v1652 = vmul.f32 %v1553, 1.442695
        %v1653 = vpow.pop %v1652
        %v1654 = vmul.f32 %v1554, 1.442695
        %v1655 = vpow.pop %v1654
        %v1656 = vmul.f32 %v1555, 1.442695
        %v1657 = vpow.pop %v1656
        %v1658 = vmul.f32 %v1556, 1.442695
        %v1659 = vpow.pop %v1658
        %v1660 = vmul.f32 %v1557, 1.442695
        %v1661 = vpow.pop %v1660
        %v1662 = vmul.f32 %v1558, 1.442695
        %v1663 = vpow.pop %v1662
        %v1664 = vmul.f32 %v1559, 1.442695
        %v1665 = vpow.pop %v1664
        %v1666 = vmul.f32 %v1560, 1.442695
        %v1667 = vpow.pop %v1666
        %v1668 = vmul.f32 %v1561, 1.442695
        %v1669 = vpow.pop %v1668
        %v1670 = vmul.f32 %v1562, 1.442695
        %v1671 = vpow.pop %v1670
        %v1672 = vmul.f32 %v1563, 1.442695
        %v1673 = vpow.pop %v1672
        %v1674 = vmul.f32 %v1564, 1.442695
        %v1675 = vpow.pop %v1674
        %v1676 = vmul.f32 %v1565, 1.442695
        %v1677 = vpow.pop %v1676
        %v1678 = vmul.f32 %v1566, 1.442695
        %v1679 = vpow.pop %v1678
        %v1680 = vmul.f32 %v1567, 1.442695
        %v1681 = vpow.pop %v1680
        %v1682 = vmul.f32 %v1568, 1.442695
        %v1683 = vpow.pop %v1682
        %v1684 = vmul.f32 %v1569, 1.442695
        %v1685 = vpow.pop %v1684
        %v1686 = vmul.f32 %v1570, 1.442695
        %v1687 = vpow.pop %v1686
        %v1688 = vmul.f32 %v1571, 1.442695
        %v1689 = vpow.pop %v1688
        %v1690 = vmul.f32 %v1572, 1.442695
        %v1691 = vpow.pop %v1690
        %v1692 = vmul.f32 %v1573, 1.442695
        %v1693 = vpow.pop %v1692
        %v1694 = vmul.f32 %v1574, 1.442695
        %v1695 = vpow.pop %v1694
        %v1696 = vmul.f32 %v1575, 1.442695
        %v1697 = vpow.pop %v1696
        %v1698 = vmul.f32 %v1576, 1.442695
        %v1699 = vpow.pop %v1698
        %v1700 = vmul.f32 %v1577, 1.442695
        %v1701 = vpow.pop %v1700
        %v1702 = vmul.f32 %v1578, 1.442695
        %v1703 = vpow.pop %v1702
        %v1704 = vmul.f32 %v1579, 1.442695
        %v1705 = vpow.pop %v1704
        %v1706 = vmul.f32 %v1580, 1.442695
        %v1707 = vpow.pop %v1706
        %v1708 = vmul.f32 %v1581, 1.442695
        %v1709 = vpow.pop %v1708
        %v1710 = vadd.f32 %v1583, 1.0
        %v1711 = vadd.f32 %v1585, 1.0
        %v1712 = vadd.f32 %v1587, 1.0
        %v1713 = vadd.f32 %v1589, 1.0
        %v1714 = vadd.f32 %v1591, 1.0
        %v1715 = vadd.f32 %v1593, 1.0
        %v1716 = vadd.f32 %v1595, 1.0
        %v1717 = vadd.f32 %v1597, 1.0
        %v1718 = vadd.f32 %v1599, 1.0
        %v1719 = vadd.f32 %v1601, 1.0
        %v1720 = vadd.f32 %v1603, 1.0
        %v1721 = vadd.f32 %v1605, 1.0
        %v1722 = vadd.f32 %v1607, 1.0
        %v1723 = vadd.f32 %v1609, 1.0
        %v1724 = vadd.f32 %v1611, 1.0
        %v1725 = vadd.f32 %v1613, 1.0
        %v1726 = vadd.f32 %v1615, 1.0
        %v1727 = vadd.f32 %v1617, 1.0
        %v1728 = vadd.f32 %v1619, 1.0
        %v1729 = vadd.f32 %v1621, 1.0
        %v1730 = vadd.f32 %v1623, 1.0
        %v1731 = vadd.f32 %v1625, 1.0
        %v1732 = vadd.f32 %v1627, 1.0
        %v1733 = vadd.f32 %v1629, 1.0
        %v1734 = vadd.f32 %v1631, 1.0
        %v1735 = vadd.f32 %v1633, 1.0
        %v1736 = vadd.f32 %v1635, 1.0
        %v1737 = vadd.f32 %v1637, 1.0
        %v1738 = vadd.f32 %v1639, 1.0
        %v1739 = vadd.f32 %v1641, 1.0
        %v1740 = vadd.f32 %v1643, 1.0
        %v1741 = vadd.f32 %v1645, 1.0
        %v1742 = vadd.f32 %v1647, 1.0
        %v1743 = vadd.f32 %v1649, 1.0
        %v1744 = vadd.f32 %v1651, 1.0
        %v1745 = vadd.f32 %v1653, 1.0
        %v1746 = vadd.f32 %v1655, 1.0
        %v1747 = vadd.f32 %v1657, 1.0
        %v1748 = vadd.f32 %v1659, 1.0
        %v1749 = vadd.f32 %v1661, 1.0
        %v1750 = vadd.f32 %v1663, 1.0
        %v1751 = vadd.f32 %v1665, 1.0
        %v1752 = vadd.f32 %v1667, 1.0
        %v1753 = vadd.f32 %v1669, 1.0
        %v1754 = vadd.f32 %v1671, 1.0
        %v1755 = vadd.f32 %v1673, 1.0
        %v1756 = vadd.f32 %v1675, 1.0
        %v1757 = vadd.f32 %v1677, 1.0
        %v1758 = vadd.f32 %v1679, 1.0
        %v1759 = vadd.f32 %v1681, 1.0
        %v1760 = vadd.f32 %v1683, 1.0
        %v1761 = vadd.f32 %v1685, 1.0
        %v1762 = vadd.f32 %v1687, 1.0
        %v1763 = vadd.f32 %v1689, 1.0
        %v1764 = vadd.f32 %v1691, 1.0
        %v1765 = vadd.f32 %v1693, 1.0
        %v1766 = vadd.f32 %v1695, 1.0
        %v1767 = vadd.f32 %v1697, 1.0
        %v1768 = vadd.f32 %v1699, 1.0
        %v1769 = vadd.f32 %v1701, 1.0
        %v1770 = vadd.f32 %v1703, 1.0
        %v1771 = vadd.f32 %v1705, 1.0
        %v1772 = vadd.f32 %v1707, 1.0
        %v1773 = vadd.f32 %v1709, 1.0
        %v1774 = vrcp.pop %v1710
        %v1775 = vmul.f32 1.0, %v1774
        %v1776 = vrcp.pop %v1711
        %v1777 = vmul.f32 1.0, %v1776
        %v1778 = vrcp.pop %v1712
        %v1779 = vmul.f32 1.0, %v1778
        %v1780 = vrcp.pop %v1713
        %v1781 = vmul.f32 1.0, %v1780
        %v1782 = vrcp.pop %v1714
        %v1783 = vmul.f32 1.0, %v1782
        %v1784 = vrcp.pop %v1715
        %v1785 = vmul.f32 1.0, %v1784
        %v1786 = vrcp.pop %v1716
        %v1787 = vmul.f32 1.0, %v1786
        %v1788 = vrcp.pop %v1717
        %v1789 = vmul.f32 1.0, %v1788
        %v1790 = vrcp.pop %v1718
        %v1791 = vmul.f32 1.0, %v1790
        %v1792 = vrcp.pop %v1719
        %v1793 = vmul.f32 1.0, %v1792
        %v1794 = vrcp.pop %v1720
        %v1795 = vmul.f32 1.0, %v1794
        %v1796 = vrcp.pop %v1721
        %v1797 = vmul.f32 1.0, %v1796
        %v1798 = vrcp.pop %v1722
        %v1799 = vmul.f32 1.0, %v1798
        %v1800 = vrcp.pop %v1723
        %v1801 = vmul.f32 1.0, %v1800
        %v1802 = vrcp.pop %v1724
        %v1803 = vmul.f32 1.0, %v1802
        %v1804 = vrcp.pop %v1725
        %v1805 = vmul.f32 1.0, %v1804
        %v1806 = vrcp.pop %v1726
        %v1807 = vmul.f32 1.0, %v1806
        %v1808 = vrcp.pop %v1727
        %v1809 = vmul.f32 1.0, %v1808
        %v1810 = vrcp.pop %v1728
        %v1811 = vmul.f32 1.0, %v1810
        %v1812 = vrcp.pop %v1729
        %v1813 = vmul.f32 1.0, %v1812
        %v1814 = vrcp.pop %v1730
        %v1815 = vmul.f32 1.0, %v1814
        %v1816 = vrcp.pop %v1731
        %v1817 = vmul.f32 1.0, %v1816
        %v1818 = vrcp.pop %v1732
        %v1819 = vmul.f32 1.0, %v1818
        %v1820 = vrcp.pop %v1733
        %v1821 = vmul.f32 1.0, %v1820
        %v1822 = vrcp.pop %v1734
        %v1823 = vmul.f32 1.0, %v1822
        %v1824 = vrcp.pop %v1735
        %v1825 = vmul.f32 1.0, %v1824
        %v1826 = vrcp.pop %v1736
        %v1827 = vmul.f32 1.0, %v1826
        %v1828 = vrcp.pop %v1737
        %v1829 = vmul.f32 1.0, %v1828
        %v1830 = vrcp.pop %v1738
        %v1831 = vmul.f32 1.0, %v1830
        %v1832 = vrcp.pop %v1739
        %v1833 = vmul.f32 1.0, %v1832
        %v1834 = vrcp.pop %v1740
        %v1835 = vmul.f32 1.0, %v1834
        %v1836 = vrcp.pop %v1741
        %v1837 = vmul.f32 1.0, %v1836
        %v1838 = vrcp.pop %v1742
        %v1839 = vmul.f32 1.0, %v1838
        %v1840 = vrcp.pop %v1743
        %v1841 = vmul.f32 1.0, %v1840
        %v1842 = vrcp.pop %v1744
        %v1843 = vmul.f32 1.0, %v1842
        %v1844 = vrcp.pop %v1745
        %v1845 = vmul.f32 1.0, %v1844
        %v1846 = vrcp.pop %v1746
        %v1847 = vmul.f32 1.0, %v1846
        %v1848 = vrcp.pop %v1747
        %v1849 = vmul.f32 1.0, %v1848
        %v1850 = vrcp.pop %v1748
        %v1851 = vmul.f32 1.0, %v1850
        %v1852 = vrcp.pop %v1749
        %v1853 = vmul.f32 1.0, %v1852
        %v1854 = vrcp.pop %v1750
        %v1855 = vmul.f32 1.0, %v1854
        %v1856 = vrcp.pop %v1751
        %v1857 = vmul.f32 1.0, %v1856
        %v1858 = vrcp.pop %v1752
        %v1859 = vmul.f32 1.0, %v1858
        %v1860 = vrcp.pop %v1753
        %v1861 = vmul.f32 1.0, %v1860
        %v1862 = vrcp.pop %v1754
        %v1863 = vmul.f32 1.0, %v1862
        %v1864 = vrcp.pop %v1755
        %v1865 = vmul.f32 1.0, %v1864
        %v1866 = vrcp.pop %v1756
        %v1867 = vmul.f32 1.0, %v1866
        %v1868 = vrcp.pop %v1757
        %v1869 = vmul.f32 1.0, %v1868
        %v1870 = vrcp.pop %v1758
        %v1871 = vmul.f32 1.0, %v1870
        %v1872 = vrcp.pop %v1759
        %v1873 = vmul.f32 1.0, %v1872
        %v1874 = vrcp.pop %v1760
        %v1875 = vmul.f32 1.0, %v1874
        %v1876 = vrcp.pop %v1761
        %v1877 = vmul.f32 1.0, %v1876
        %v1878 = vrcp.pop %v1762
        %v1879 = vmul.f32 1.0, %v1878
        %v1880 = vrcp.pop %v1763
        %v1881 = vmul.f32 1.0, %v1880
        %v1882 = vrcp.pop %v1764
        %v1883 = vmul.f32 1.0, %v1882
        %v1884 = vrcp.pop %v1765
        %v1885 = vmul.f32 1.0, %v1884
        %v1886 = vrcp.pop %v1766
        %v1887 = vmul.f32 1.0, %v1886
        %v1888 = vrcp.pop %v1767
        %v1889 = vmul.f32 1.0, %v1888
        %v1890 = vrcp.pop %v1768
        %v1891 = vmul.f32 1.0, %v1890
        %v1892 = vrcp.pop %v1769
        %v1893 = vmul.f32 1.0, %v1892
        %v1894 = vrcp.pop %v1770
        %v1895 = vmul.f32 1.0, %v1894
        %v1896 = vrcp.pop %v1771
        %v1897 = vmul.f32 1.0, %v1896
        %v1898 = vrcp.pop %v1772
        %v1899 = vmul.f32 1.0, %v1898
        %v1900 = vrcp.pop %v1773
        %v1901 = vmul.f32 1.0, %v1900
        %v1902 = vmul.f32 %v1360, %v1775
        %v1903 = vmul.f32 %v1362, %v1777
        %v1904 = vmul.f32 %v1364, %v1779
        %v1905 = vmul.f32 %v1366, %v1781
        %v1906 = vmul.f32 %v1370, %v1783
        %v1907 = vmul.f32 %v1372, %v1785
        %v1908 = vmul.f32 %v1374, %v1787
        %v1909 = vmul.f32 %v1376, %v1789
        %v1910 = vmul.f32 %v1380, %v1791
        %v1911 = vmul.f32 %v1382, %v1793
        %v1912 = vmul.f32 %v1384, %v1795
        %v1913 = vmul.f32 %v1386, %v1797
        %v1914 = vmul.f32 %v1390, %v1799
        %v1915 = vmul.f32 %v1392, %v1801
        %v1916 = vmul.f32 %v1394, %v1803
        %v1917 = vmul.f32 %v1396, %v1805
        %v1918 = vmul.f32 %v1400, %v1807
        %v1919 = vmul.f32 %v1402, %v1809
        %v1920 = vmul.f32 %v1404, %v1811
        %v1921 = vmul.f32 %v1406, %v1813
        %v1922 = vmul.f32 %v1410, %v1815
        %v1923 = vmul.f32 %v1412, %v1817
        %v1924 = vmul.f32 %v1414, %v1819
        %v1925 = vmul.f32 %v1416, %v1821
        %v1926 = vmul.f32 %v1420, %v1823
        %v1927 = vmul.f32 %v1422, %v1825
        %v1928 = vmul.f32 %v1424, %v1827
        %v1929 = vmul.f32 %v1426, %v1829
        %v1930 = vmul.f32 %v1430, %v1831
        %v1931 = vmul.f32 %v1432, %v1833
        %v1932 = vmul.f32 %v1434, %v1835
        %v1933 = vmul.f32 %v1436, %v1837
        %v1934 = vmul.f32 %v1440, %v1839
        %v1935 = vmul.f32 %v1442, %v1841
        %v1936 = vmul.f32 %v1444, %v1843
        %v1937 = vmul.f32 %v1446, %v1845
        %v1938 = vmul.f32 %v1450, %v1847
        %v1939 = vmul.f32 %v1452, %v1849
        %v1940 = vmul.f32 %v1454, %v1851
        %v1941 = vmul.f32 %v1456, %v1853
        %v1942 = vmul.f32 %v1460, %v1855
        %v1943 = vmul.f32 %v1462, %v1857
        %v1944 = vmul.f32 %v1464, %v1859
        %v1945 = vmul.f32 %v1466, %v1861
        %v1946 = vmul.f32 %v1470, %v1863
        %v1947 = vmul.f32 %v1472, %v1865
        %v1948 = vmul.f32 %v1474, %v1867
        %v1949 = vmul.f32 %v1476, %v1869
        %v1950 = vmul.f32 %v1480, %v1871
        %v1951 = vmul.f32 %v1482, %v1873
        %v1952 = vmul.f32 %v1484, %v1875
        %v1953 = vmul.f32 %v1486, %v1877
        %v1954 = vmul.f32 %v1490, %v1879
        %v1955 = vmul.f32 %v1492, %v1881
        %v1956 = vmul.f32 %v1494, %v1883
        %v1957 = vmul.f32 %v1496, %v1885
        %v1958 = vmul.f32 %v1500, %v1887
        %v1959 = vmul.f32 %v1502, %v1889
        %v1960 = vmul.f32 %v1504, %v1891
        %v1961 = vmul.f32 %v1506, %v1893
        %v1962 = vmul.f32 %v1510, %v1895
        %v1963 = vmul.f32 %v1512, %v1897
        %v1964 = vmul.f32 %v1514, %v1899
        %v1965 = vmul.f32 %v1516, %v1901
        %v1966 = vmul.f32 %v963, %v1902
        %v1967 = vmul.f32 %v965, %v1903
        %v1968 = vmul.f32 %v967, %v1904
        %v1969 = vmul.f32 %v969, %v1905
        %v1970 = vmul.f32 %v973, %v1906
        %v1971 = vmul.f32 %v975, %v1907
        %v1972 = vmul.f32 %v977, %v1908
        %v1973 = vmul.f32 %v979, %v1909
        %v1974 = vmul.f32 %v983, %v1910
        %v1975 = vmul.f32 %v985, %v1911
        %v1976 = vmul.f32 %v987, %v1912
        %v1977 = vmul.f32 %v989, %v1913
        %v1978 = vmul.f32 %v993, %v1914
        %v1979 = vmul.f32 %v995, %v1915
        %v1980 = vmul.f32 %v997, %v1916
        %v1981 = vmul.f32 %v999, %v1917
        %v1982 = vmul.f32 %v1003, %v1918
        %v1983 = vmul.f32 %v1005, %v1919
        %v1984 = vmul.f32 %v1007, %v1920
        %v1985 = vmul.f32 %v1009, %v1921
        %v1986 = vmul.f32 %v1013, %v1922
        %v1987 = vmul.f32 %v1015, %v1923
        %v1988 = vmul.f32 %v1017, %v1924
        %v1989 = vmul.f32 %v1019, %v1925
        %v1990 = vmul.f32 %v1023, %v1926
        %v1991 = vmul.f32 %v1025, %v1927
        %v1992 = vmul.f32 %v1027, %v1928
        %v1993 = vmul.f32 %v1029, %v1929
        %v1994 = vmul.f32 %v1033, %v1930
        %v1995 = vmul.f32 %v1035, %v1931
        %v1996 = vmul.f32 %v1037, %v1932
        %v1997 = vmul.f32 %v1039, %v1933
        %v1998 = vmul.f32 %v1043, %v1934
        %v1999 = vmul.f32 %v1045, %v1935
        %v2000 = vmul.f32 %v1047, %v1936
        %v2001 = vmul.f32 %v1049, %v1937
        %v2002 = vmul.f32 %v1053, %v1938
        %v2003 = vmul.f32 %v1055, %v1939
        %v2004 = vmul.f32 %v1057, %v1940
        %v2005 = vmul.f32 %v1059, %v1941
        %v2006 = vmul.f32 %v1063, %v1942
        %v2007 = vmul.f32 %v1065, %v1943
        %v2008 = vmul.f32 %v1067, %v1944
        %v2009 = vmul.f32 %v1069, %v1945
        %v2010 = vmul.f32 %v1073, %v1946
        %v2011 = vmul.f32 %v1075, %v1947
        %v2012 = vmul.f32 %v1077, %v1948
        %v2013 = vmul.f32 %v1079, %v1949
        %v2014 = vmul.f32 %v1083, %v1950
        %v2015 = vmul.f32 %v1085, %v1951
        %v2016 = vmul.f32 %v1087, %v1952
        %v2017 = vmul.f32 %v1089, %v1953
        %v2018 = vmul.f32 %v1093, %v1954
        %v2019 = vmul.f32 %v1095, %v1955
        %v2020 = vmul.f32 %v1097, %v1956
        %v2021 = vmul.f32 %v1099, %v1957
        %v2022 = vmul.f32 %v1103, %v1958
        %v2023 = vmul.f32 %v1105, %v1959
        %v2024 = vmul.f32 %v1107, %v1960
        %v2025 = vmul.f32 %v1109, %v1961
        %v2026 = vmul.f32 %v1113, %v1962
        %v2027 = vmul.f32 %v1115, %v1963
        %v2028 = vmul.f32 %v1117, %v1964
        %v2029 = vmul.f32 %v1119, %v1965
        %v2030 = vpack.c.bf16 %v1968, %v1966
        %v2031 = vpack.c.bf16 %v1969, %v1967
        %v2032 = vpack.c.bf16 %v1972, %v1970
        %v2033 = vpack.c.bf16 %v1973, %v1971
        %v2034 = vpack.c.bf16 %v1976, %v1974
        %v2035 = vpack.c.bf16 %v1977, %v1975
        %v2036 = vpack.c.bf16 %v1980, %v1978
        %v2037 = vpack.c.bf16 %v1981, %v1979
        %v2038 = vpack.c.bf16 %v1984, %v1982
        %v2039 = vpack.c.bf16 %v1985, %v1983
        %v2040 = vpack.c.bf16 %v1988, %v1986
        %v2041 = vpack.c.bf16 %v1989, %v1987
        %v2042 = vpack.c.bf16 %v1992, %v1990
        %v2043 = vpack.c.bf16 %v1993, %v1991
        %v2044 = vpack.c.bf16 %v1996, %v1994
        %v2045 = vpack.c.bf16 %v1997, %v1995
        %v2046 = vpack.c.bf16 %v2000, %v1998
        %v2047 = vpack.c.bf16 %v2001, %v1999
        %v2048 = vpack.c.bf16 %v2004, %v2002
        %v2049 = vpack.c.bf16 %v2005, %v2003
        %v2050 = vpack.c.bf16 %v2008, %v2006
        %v2051 = vpack.c.bf16 %v2009, %v2007
        %v2052 = vpack.c.bf16 %v2012, %v2010
        %v2053 = vpack.c.bf16 %v2013, %v2011
        %v2054 = vpack.c.bf16 %v2016, %v2014
        %v2055 = vpack.c.bf16 %v2017, %v2015
        %v2056 = vpack.c.bf16 %v2020, %v2018
        %v2057 = vpack.c.bf16 %v2021, %v2019
        %v2058 = vpack.c.bf16 %v2024, %v2022
        %v2059 = vpack.c.bf16 %v2025, %v2023
        %v2060 = vpack.c.bf16 %v2028, %v2026
        %v2061 = vpack.c.bf16 %v2029, %v2027
        %v2062 = vld [vmem:[#allocation11] sm:$0xff]
        %v2063 = vld [vmem:[#allocation11 + $0x8] sm:$0xff]
        %v2064 = vld [vmem:[#allocation11 + $0x10] sm:$0xff]
        %v2065 = vld [vmem:[#allocation11 + $0x18] sm:$0xff]
        %v2066 = vld [vmem:[#allocation11 + $0x20] sm:$0xff]
        %v2067 = vld [vmem:[#allocation11 + $0x28] sm:$0xff]
        %v2068 = vld [vmem:[#allocation11 + $0x30] sm:$0xff]
        %v2069 = vld [vmem:[#allocation11 + $0x38] sm:$0xff]
        %v2070 = vld [vmem:[#allocation11 + $0x40] sm:$0xff]
        %v2071 = vld [vmem:[#allocation11 + $0x48] sm:$0xff]
        %v2072 = vld [vmem:[#allocation11 + $0x50] sm:$0xff]
        %v2073 = vld [vmem:[#allocation11 + $0x58] sm:$0xff]
        %v2074 = vld [vmem:[#allocation11 + $0x60] sm:$0xff]
        %v2075 = vld [vmem:[#allocation11 + $0x68] sm:$0xff]
        %v2076 = vld [vmem:[#allocation11 + $0x70] sm:$0xff]
        %v2077 = vld [vmem:[#allocation11 + $0x78] sm:$0xff]
        %v2078 = vld [vmem:[#allocation11 + $0x80] sm:$0xff]
        %v2079 = vld [vmem:[#allocation11 + $0x88] sm:$0xff]
        %v2080 = vld [vmem:[#allocation11 + $0x90] sm:$0xff]
        %v2081 = vld [vmem:[#allocation11 + $0x98] sm:$0xff]
        %v2082 = vld [vmem:[#allocation11 + $0xa0] sm:$0xff]
        %v2083 = vld [vmem:[#allocation11 + $0xa8] sm:$0xff]
        %v2084 = vld [vmem:[#allocation11 + $0xb0] sm:$0xff]
        %v2085 = vld [vmem:[#allocation11 + $0xb8] sm:$0xff]
        %v2086 = vld [vmem:[#allocation11 + $0xc0] sm:$0xff]
        %v2087 = vld [vmem:[#allocation11 + $0xc8] sm:$0xff]
        %v2088 = vld [vmem:[#allocation11 + $0xd0] sm:$0xff]
        %v2089 = vld [vmem:[#allocation11 + $0xd8] sm:$0xff]
        %v2090 = vld [vmem:[#allocation11 + $0xe0] sm:$0xff]
        %v2091 = vld [vmem:[#allocation11 + $0xe8] sm:$0xff]
        %v2092 = vld [vmem:[#allocation11 + $0xf0] sm:$0xff]
        %v2093 = vld [vmem:[#allocation11 + $0xf8] sm:$0xff]
        %v2094 = vld [vmem:[#allocation11 + $0x100] sm:$0xff]
        %v2095 = vld [vmem:[#allocation11 + $0x108] sm:$0xff]
        %v2096 = vld [vmem:[#allocation11 + $0x110] sm:$0xff]
        %v2097 = vld [vmem:[#allocation11 + $0x118] sm:$0xff]
        %v2098 = vld [vmem:[#allocation11 + $0x120] sm:$0xff]
        %v2099 = vld [vmem:[#allocation11 + $0x128] sm:$0xff]
        %v2100 = vld [vmem:[#allocation11 + $0x130] sm:$0xff]
        %v2101 = vld [vmem:[#allocation11 + $0x138] sm:$0xff]
        %v2102 = vld [vmem:[#allocation11 + $0x140] sm:$0xff]
        %v2103 = vld [vmem:[#allocation11 + $0x148] sm:$0xff]
        %v2104 = vld [vmem:[#allocation11 + $0x150] sm:$0xff]
        %v2105 = vld [vmem:[#allocation11 + $0x158] sm:$0xff]
        %v2106 = vld [vmem:[#allocation11 + $0x160] sm:$0xff]
        %v2107 = vld [vmem:[#allocation11 + $0x168] sm:$0xff]
        %v2108 = vld [vmem:[#allocation11 + $0x170] sm:$0xff]
        %v2109 = vld [vmem:[#allocation11 + $0x178] sm:$0xff]
        %v2110 = vld [vmem:[#allocation11 + $0x180] sm:$0xff]
        %v2111 = vld [vmem:[#allocation11 + $0x188] sm:$0xff]
        %v2112 = vld [vmem:[#allocation11 + $0x190] sm:$0xff]
        %v2113 = vld [vmem:[#allocation11 + $0x198] sm:$0xff]
        %v2114 = vld [vmem:[#allocation11 + $0x1a0] sm:$0xff]
        %v2115 = vld [vmem:[#allocation11 + $0x1a8] sm:$0xff]
        %v2116 = vld [vmem:[#allocation11 + $0x1b0] sm:$0xff]
        %v2117 = vld [vmem:[#allocation11 + $0x1b8] sm:$0xff]
        %v2118 = vld [vmem:[#allocation11 + $0x1c0] sm:$0xff]
        %v2119 = vld [vmem:[#allocation11 + $0x1c8] sm:$0xff]
        %v2120 = vld [vmem:[#allocation11 + $0x1d0] sm:$0xff]
        %v2121 = vld [vmem:[#allocation11 + $0x1d8] sm:$0xff]
        %v2122 = vld [vmem:[#allocation11 + $0x1e0] sm:$0xff]
        %v2123 = vld [vmem:[#allocation11 + $0x1e8] sm:$0xff]
        %v2124 = vld [vmem:[#allocation11 + $0x1f0] sm:$0xff]
        %v2125 = vld [vmem:[#allocation11 + $0x1f8] sm:$0xff]
        %v2126 = vld [vmem:[%s408] sm:$0xff]
        %v2127 = vld [vmem:[%s408 + $0x8] sm:$0xff]
        %v2128 = vld [vmem:[%s408 + $0x10] sm:$0xff]
        %v2129 = vld [vmem:[%s408 + $0x18] sm:$0xff]
        %v2130 = vld [vmem:[%s408 + $0x20] sm:$0xff]
        %v2131 = vld [vmem:[%s408 + $0x28] sm:$0xff]
        %v2132 = vld [vmem:[%s408 + $0x30] sm:$0xff]
        %v2133 = vld [vmem:[%s408 + $0x38] sm:$0xff]
        %v2134 = vld [vmem:[%s408 + $0x40] sm:$0xff]
        %v2135 = vld [vmem:[%s408 + $0x48] sm:$0xff]
        %v2136 = vld [vmem:[%s408 + $0x50] sm:$0xff]
        %v2137 = vld [vmem:[%s408 + $0x58] sm:$0xff]
        %v2138 = vld [vmem:[%s408 + $0x60] sm:$0xff]
        %v2139 = vld [vmem:[%s408 + $0x68] sm:$0xff]
        %v2140 = vld [vmem:[%s408 + $0x70] sm:$0xff]
        %v2141 = vld [vmem:[%s408 + $0x78] sm:$0xff]
        %v2142 = vld [vmem:[%s408 + $0x80] sm:$0xff]
        %v2143 = vld [vmem:[%s408 + $0x88] sm:$0xff]
        %v2144 = vld [vmem:[%s408 + $0x90] sm:$0xff]
        %v2145 = vld [vmem:[%s408 + $0x98] sm:$0xff]
        %v2146 = vld [vmem:[%s408 + $0xa0] sm:$0xff]
        %v2147 = vld [vmem:[%s408 + $0xa8] sm:$0xff]
        %v2148 = vld [vmem:[%s408 + $0xb0] sm:$0xff]
        %v2149 = vld [vmem:[%s408 + $0xb8] sm:$0xff]
        %v2150 = vld [vmem:[%s408 + $0xc0] sm:$0xff]
        %v2151 = vld [vmem:[%s408 + $0xc8] sm:$0xff]
        %v2152 = vld [vmem:[%s408 + $0xd0] sm:$0xff]
        %v2153 = vld [vmem:[%s408 + $0xd8] sm:$0xff]
        %v2154 = vld [vmem:[%s408 + $0xe0] sm:$0xff]
        %v2155 = vld [vmem:[%s408 + $0xe8] sm:$0xff]
        %v2156 = vld [vmem:[%s408 + $0xf0] sm:$0xff]
        %v2157 = vld [vmem:[%s408 + $0xf8] sm:$0xff]
        %v2190 = vunpack.c.l.b16 %v2126
        %v2191 = vunpack.c.h.b16 %v2126
        %v2192 = vunpack.c.l.b16 %v2127
        %v2193 = vunpack.c.h.b16 %v2127
        %v2194 = vunpack.c.l.b16 %v2128
        %v2195 = vunpack.c.h.b16 %v2128
        %v2196 = vunpack.c.l.b16 %v2129
        %v2197 = vunpack.c.h.b16 %v2129
        %v2198 = vunpack.c.l.b16 %v2130
        %v2199 = vunpack.c.h.b16 %v2130
        %v2200 = vunpack.c.l.b16 %v2131
        %v2201 = vunpack.c.h.b16 %v2131
        %v2202 = vunpack.c.l.b16 %v2132
        %v2203 = vunpack.c.h.b16 %v2132
        %v2204 = vunpack.c.l.b16 %v2133
        %v2205 = vunpack.c.h.b16 %v2133
        %v2206 = vunpack.c.l.b16 %v2134
        %v2207 = vunpack.c.h.b16 %v2134
        %v2208 = vunpack.c.l.b16 %v2135
        %v2209 = vunpack.c.h.b16 %v2135
        %v2210 = vunpack.c.l.b16 %v2136
        %v2211 = vunpack.c.h.b16 %v2136
        %v2212 = vunpack.c.l.b16 %v2137
        %v2213 = vunpack.c.h.b16 %v2137
        %v2214 = vunpack.c.l.b16 %v2138
        %v2215 = vunpack.c.h.b16 %v2138
        %v2216 = vunpack.c.l.b16 %v2139
        %v2217 = vunpack.c.h.b16 %v2139
        %v2218 = vunpack.c.l.b16 %v2140
        %v2219 = vunpack.c.h.b16 %v2140
        %v2220 = vunpack.c.l.b16 %v2141
        %v2221 = vunpack.c.h.b16 %v2141
        %v2222 = vunpack.c.l.b16 %v2142
        %v2223 = vunpack.c.h.b16 %v2142
        %v2224 = vunpack.c.l.b16 %v2143
        %v2225 = vunpack.c.h.b16 %v2143
        %v2226 = vunpack.c.l.b16 %v2144
        %v2227 = vunpack.c.h.b16 %v2144
        %v2228 = vunpack.c.l.b16 %v2145
        %v2229 = vunpack.c.h.b16 %v2145
        %v2230 = vunpack.c.l.b16 %v2146
        %v2231 = vunpack.c.h.b16 %v2146
        %v2232 = vunpack.c.l.b16 %v2147
        %v2233 = vunpack.c.h.b16 %v2147
        %v2234 = vunpack.c.l.b16 %v2148
        %v2235 = vunpack.c.h.b16 %v2148
        %v2236 = vunpack.c.l.b16 %v2149
        %v2237 = vunpack.c.h.b16 %v2149
        %v2238 = vunpack.c.l.b16 %v2150
        %v2239 = vunpack.c.h.b16 %v2150
        %v2240 = vunpack.c.l.b16 %v2151
        %v2241 = vunpack.c.h.b16 %v2151
        %v2242 = vunpack.c.l.b16 %v2152
        %v2243 = vunpack.c.h.b16 %v2152
        %v2244 = vunpack.c.l.b16 %v2153
        %v2245 = vunpack.c.h.b16 %v2153
        %v2246 = vunpack.c.l.b16 %v2154
        %v2247 = vunpack.c.h.b16 %v2154
        %v2248 = vunpack.c.l.b16 %v2155
        %v2249 = vunpack.c.h.b16 %v2155
        %v2250 = vunpack.c.l.b16 %v2156
        %v2251 = vunpack.c.h.b16 %v2156
        %v2252 = vunpack.c.l.b16 %v2157
        %v2253 = vunpack.c.h.b16 %v2157
        %v2254 = vpack.c.b16 %v2192, %v2190
        %v2255 = vpack.c.b16 %v2193, %v2191
        %v2256 = vpack.c.b16 %v2196, %v2194
        %v2257 = vpack.c.b16 %v2197, %v2195
        %v2258 = vpack.c.b16 %v2200, %v2198
        %v2259 = vpack.c.b16 %v2201, %v2199
        %v2260 = vpack.c.b16 %v2204, %v2202
        %v2261 = vpack.c.b16 %v2205, %v2203
        %v2262 = vpack.c.b16 %v2208, %v2206
        %v2263 = vpack.c.b16 %v2209, %v2207
        %v2264 = vpack.c.b16 %v2212, %v2210
        %v2265 = vpack.c.b16 %v2213, %v2211
        %v2266 = vpack.c.b16 %v2216, %v2214
        %v2267 = vpack.c.b16 %v2217, %v2215
        %v2268 = vpack.c.b16 %v2220, %v2218
        %v2269 = vpack.c.b16 %v2221, %v2219
        %v2270 = vpack.c.b16 %v2224, %v2222
        %v2271 = vpack.c.b16 %v2225, %v2223
        %v2272 = vpack.c.b16 %v2228, %v2226
        %v2273 = vpack.c.b16 %v2229, %v2227
        %v2274 = vpack.c.b16 %v2232, %v2230
        %v2275 = vpack.c.b16 %v2233, %v2231
        %v2276 = vpack.c.b16 %v2236, %v2234
        %v2277 = vpack.c.b16 %v2237, %v2235
        %v2278 = vpack.c.b16 %v2240, %v2238
        %v2279 = vpack.c.b16 %v2241, %v2239
        %v2280 = vpack.c.b16 %v2244, %v2242
        %v2281 = vpack.c.b16 %v2245, %v2243
        %v2282 = vpack.c.b16 %v2248, %v2246
        %v2283 = vpack.c.b16 %v2249, %v2247
        %v2284 = vpack.c.b16 %v2252, %v2250
        %v2285 = vpack.c.b16 %v2253, %v2251
        %2318 = vmatprep.subr.bf16.mxu0 %v2269
        %2319 = vmatpush1.bf16.msra.mxu0 %v2268
        %2320 = vmatprep.subr.bf16.mxu0 %v2267
        %2321 = vmatpush1.bf16.msra.mxu0 %v2266
        %2322 = vmatprep.subr.bf16.mxu0 %v2265
        %2323 = vmatpush1.bf16.msra.mxu0 %v2264
        %2324 = vmatprep.subr.bf16.mxu0 %v2263
        %2325 = vmatpush1.bf16.msra.mxu0 %v2262
        %2326 = vmatprep.subr.bf16.mxu0 %v2261
        %2327 = vmatpush1.bf16.msra.mxu0 %v2260
        %2328 = vmatprep.subr.bf16.mxu0 %v2259
        %2329 = vmatpush1.bf16.msra.mxu0 %v2258
        %2330 = vmatprep.subr.bf16.mxu0 %v2257
        %2331 = vmatpush1.bf16.msra.mxu0 %v2256
        %2332 = vmatprep.subr.bf16.mxu0 %v2255
        %2333 = vmatpush1.bf16.msra.mxu0 %v2254
        %2334 = vmatprep.subr.bf16.mxu0 %v2285
        %2335 = vmatpush2.bf16.msra.mxu0 %v2284
        %2336 = vmatprep.subr.bf16.mxu0 %v2283
        %2337 = vmatpush2.bf16.msra.mxu0 %v2282
        %2338 = vmatprep.subr.bf16.mxu0 %v2281
        %2339 = vmatpush2.bf16.msra.mxu0 %v2280
        %2340 = vmatprep.subr.bf16.mxu0 %v2279
        %2341 = vmatpush2.bf16.msra.mxu0 %v2278
        %2342 = vmatprep.subr.bf16.mxu0 %v2277
        %2343 = vmatpush2.bf16.msra.mxu0 %v2276
        %2344 = vmatprep.subr.bf16.mxu0 %v2275
        %2345 = vmatpush2.bf16.msra.mxu0 %v2274
        %2346 = vmatprep.subr.bf16.mxu0 %v2273
        %2347 = vmatpush2.bf16.msra.mxu0 %v2272
        %2348 = vmatprep.subr.bf16.mxu0 %v2271
        %2349 = vmatpush2.bf16.msra.mxu0 %v2270
        %2350 = vmatprep.mubr.bf16.mxu0 %v2031
        %2351 = vmatmul.mubr.bf16.gmra.mxu0 %v2030
        %v2352 = vpop.f32.mrf.mxu0
        %v2353 = vadd.f32 0.0, %v2352
        %v2354 = vpop.f32.mrf.mxu0
        %v2355 = vadd.f32 0.0, %v2354
        %v2356 = vpop.f32.mrf.mxu0
        %v2357 = vadd.f32 0.0, %v2356
        %v2358 = vpop.f32.mrf.mxu0
        %v2359 = vadd.f32 0.0, %v2358
        %2360 = vmatprep.mubr.bf16.mxu0 %v2033
        %2361 = vmatmul.mubr.bf16.gmra.mxu0 %v2032
        %v2362 = vpop.f32.mrf.mxu0
        %v2363 = vadd.f32 0.0, %v2362
        %v2364 = vpop.f32.mrf.mxu0
        %v2365 = vadd.f32 0.0, %v2364
        %v2366 = vpop.f32.mrf.mxu0
        %v2367 = vadd.f32 0.0, %v2366
        %v2368 = vpop.f32.mrf.mxu0
        %v2369 = vadd.f32 0.0, %v2368
        %2370 = vmatprep.mubr.bf16.mxu0 %v2035
        %2371 = vmatmul.mubr.bf16.gmra.mxu0 %v2034
        %v2372 = vpop.f32.mrf.mxu0
        %v2373 = vadd.f32 0.0, %v2372
        %v2374 = vpop.f32.mrf.mxu0
        %v2375 = vadd.f32 0.0, %v2374
        %v2376 = vpop.f32.mrf.mxu0
        %v2377 = vadd.f32 0.0, %v2376
        %v2378 = vpop.f32.mrf.mxu0
        %v2379 = vadd.f32 0.0, %v2378
        %2380 = vmatprep.mubr.bf16.mxu0 %v2037
        %2381 = vmatmul.mubr.bf16.gmra.mxu0 %v2036
        %v2382 = vpop.f32.mrf.mxu0
        %v2383 = vadd.f32 0.0, %v2382
        %v2384 = vpop.f32.mrf.mxu0
        %v2385 = vadd.f32 0.0, %v2384
        %v2386 = vpop.f32.mrf.mxu0
        %v2387 = vadd.f32 0.0, %v2386
        %v2388 = vpop.f32.mrf.mxu0
        %v2389 = vadd.f32 0.0, %v2388
        %2390 = vmatprep.mubr.bf16.mxu0 %v2039
        %2391 = vmatmul.mubr.bf16.gmra.mxu0 %v2038
        %v2392 = vpop.f32.mrf.mxu0
        %v2393 = vadd.f32 0.0, %v2392
        %v2394 = vpop.f32.mrf.mxu0
        %v2395 = vadd.f32 0.0, %v2394
        %v2396 = vpop.f32.mrf.mxu0
        %v2397 = vadd.f32 0.0, %v2396
        %v2398 = vpop.f32.mrf.mxu0
        %v2399 = vadd.f32 0.0, %v2398
        %2400 = vmatprep.mubr.bf16.mxu0 %v2041
        %2401 = vmatmul.mubr.bf16.gmra.mxu0 %v2040
        %v2402 = vpop.f32.mrf.mxu0
        %v2403 = vadd.f32 0.0, %v2402
        %v2404 = vpop.f32.mrf.mxu0
        %v2405 = vadd.f32 0.0, %v2404
        %v2406 = vpop.f32.mrf.mxu0
        %v2407 = vadd.f32 0.0, %v2406
        %v2408 = vpop.f32.mrf.mxu0
        %v2409 = vadd.f32 0.0, %v2408
        %2410 = vmatprep.mubr.bf16.mxu0 %v2043
        %2411 = vmatmul.mubr.bf16.gmra.mxu0 %v2042
        %v2412 = vpop.f32.mrf.mxu0
        %v2413 = vadd.f32 0.0, %v2412
        %v2414 = vpop.f32.mrf.mxu0
        %v2415 = vadd.f32 0.0, %v2414
        %v2416 = vpop.f32.mrf.mxu0
        %v2417 = vadd.f32 0.0, %v2416
        %v2418 = vpop.f32.mrf.mxu0
        %v2419 = vadd.f32 0.0, %v2418
        %2420 = vmatprep.mubr.bf16.mxu0 %v2045
        %2421 = vmatmul.mubr.bf16.gmra.mxu0 %v2044
        %v2422 = vpop.f32.mrf.mxu0
        %v2423 = vadd.f32 0.0, %v2422
        %v2424 = vpop.f32.mrf.mxu0
        %v2425 = vadd.f32 0.0, %v2424
        %v2426 = vpop.f32.mrf.mxu0
        %v2427 = vadd.f32 0.0, %v2426
        %v2428 = vpop.f32.mrf.mxu0
        %v2429 = vadd.f32 0.0, %v2428
        %2430 = vmatprep.mubr.bf16.mxu0 %v2047
        %2431 = vmatmul.mubr.bf16.gmra.mxu0 %v2046
        %v2432 = vpop.f32.mrf.mxu0
        %v2433 = vadd.f32 0.0, %v2432
        %v2434 = vpop.f32.mrf.mxu0
        %v2435 = vadd.f32 0.0, %v2434
        %v2436 = vpop.f32.mrf.mxu0
        %v2437 = vadd.f32 0.0, %v2436
        %v2438 = vpop.f32.mrf.mxu0
        %v2439 = vadd.f32 0.0, %v2438
        %2440 = vmatprep.mubr.bf16.mxu0 %v2049
        %2441 = vmatmul.mubr.bf16.gmra.mxu0 %v2048
        %v2442 = vpop.f32.mrf.mxu0
        %v2443 = vadd.f32 0.0, %v2442
        %v2444 = vpop.f32.mrf.mxu0
        %v2445 = vadd.f32 0.0, %v2444
        %v2446 = vpop.f32.mrf.mxu0
        %v2447 = vadd.f32 0.0, %v2446
        %v2448 = vpop.f32.mrf.mxu0
        %v2449 = vadd.f32 0.0, %v2448
        %2450 = vmatprep.mubr.bf16.mxu0 %v2051
        %2451 = vmatmul.mubr.bf16.gmra.mxu0 %v2050
        %v2452 = vpop.f32.mrf.mxu0
        %v2453 = vadd.f32 0.0, %v2452
        %v2454 = vpop.f32.mrf.mxu0
        %v2455 = vadd.f32 0.0, %v2454
        %v2456 = vpop.f32.mrf.mxu0
        %v2457 = vadd.f32 0.0, %v2456
        %v2458 = vpop.f32.mrf.mxu0
        %v2459 = vadd.f32 0.0, %v2458
        %2460 = vmatprep.mubr.bf16.mxu0 %v2053
        %2461 = vmatmul.mubr.bf16.gmra.mxu0 %v2052
        %v2462 = vpop.f32.mrf.mxu0
        %v2463 = vadd.f32 0.0, %v2462
        %v2464 = vpop.f32.mrf.mxu0
        %v2465 = vadd.f32 0.0, %v2464
        %v2466 = vpop.f32.mrf.mxu0
        %v2467 = vadd.f32 0.0, %v2466
        %v2468 = vpop.f32.mrf.mxu0
        %v2469 = vadd.f32 0.0, %v2468
        %2470 = vmatprep.mubr.bf16.mxu0 %v2055
        %2471 = vmatmul.mubr.bf16.gmra.mxu0 %v2054
        %v2472 = vpop.f32.mrf.mxu0
        %v2473 = vadd.f32 0.0, %v2472
        %v2474 = vpop.f32.mrf.mxu0
        %v2475 = vadd.f32 0.0, %v2474
        %v2476 = vpop.f32.mrf.mxu0
        %v2477 = vadd.f32 0.0, %v2476
        %v2478 = vpop.f32.mrf.mxu0
        %v2479 = vadd.f32 0.0, %v2478
        %2480 = vmatprep.mubr.bf16.mxu0 %v2057
        %2481 = vmatmul.mubr.bf16.gmra.mxu0 %v2056
        %v2482 = vpop.f32.mrf.mxu0
        %v2483 = vadd.f32 0.0, %v2482
        %v2484 = vpop.f32.mrf.mxu0
        %v2485 = vadd.f32 0.0, %v2484
        %v2486 = vpop.f32.mrf.mxu0
        %v2487 = vadd.f32 0.0, %v2486
        %v2488 = vpop.f32.mrf.mxu0
        %v2489 = vadd.f32 0.0, %v2488
        %2490 = vmatprep.mubr.bf16.mxu0 %v2059
        %2491 = vmatmul.mubr.bf16.gmra.mxu0 %v2058
        %v2492 = vpop.f32.mrf.mxu0
        %v2493 = vadd.f32 0.0, %v2492
        %v2494 = vpop.f32.mrf.mxu0
        %v2495 = vadd.f32 0.0, %v2494
        %v2496 = vpop.f32.mrf.mxu0
        %v2497 = vadd.f32 0.0, %v2496
        %v2498 = vpop.f32.mrf.mxu0
        %v2499 = vadd.f32 0.0, %v2498
        %2500 = vmatprep.mubr.bf16.mxu0 %v2061
        %2501 = vmatmul.mubr.bf16.gmra.mxu0 %v2060
        %v2502 = vpop.f32.mrf.mxu0
        %v2503 = vadd.f32 0.0, %v2502
        %v2504 = vpop.f32.mrf.mxu0
        %v2505 = vadd.f32 0.0, %v2504
        %v2506 = vpop.f32.mrf.mxu0
        %v2507 = vadd.f32 0.0, %v2506
        %v2508 = vpop.f32.mrf.mxu0
        %v2509 = vadd.f32 0.0, %v2508
        %2510 = vdwg.mxu0
        %v2511 = vadd.f32 %v2062, %v2353
        %v2512 = vadd.f32 %v2063, %v2355
        %v2513 = vadd.f32 %v2064, %v2357
        %v2514 = vadd.f32 %v2065, %v2359
        %v2515 = vadd.f32 %v2066, %v2363
        %v2516 = vadd.f32 %v2067, %v2365
        %v2517 = vadd.f32 %v2068, %v2367
        %v2518 = vadd.f32 %v2069, %v2369
        %v2519 = vadd.f32 %v2070, %v2373
        %v2520 = vadd.f32 %v2071, %v2375
        %v2521 = vadd.f32 %v2072, %v2377
        %v2522 = vadd.f32 %v2073, %v2379
        %v2523 = vadd.f32 %v2074, %v2383
        %v2524 = vadd.f32 %v2075, %v2385
        %v2525 = vadd.f32 %v2076, %v2387
        %v2526 = vadd.f32 %v2077, %v2389
        %v2527 = vadd.f32 %v2078, %v2393
        %v2528 = vadd.f32 %v2079, %v2395
        %v2529 = vadd.f32 %v2080, %v2397
        %v2530 = vadd.f32 %v2081, %v2399
        %v2531 = vadd.f32 %v2082, %v2403
        %v2532 = vadd.f32 %v2083, %v2405
        %v2533 = vadd.f32 %v2084, %v2407
        %v2534 = vadd.f32 %v2085, %v2409
        %v2535 = vadd.f32 %v2086, %v2413
        %v2536 = vadd.f32 %v2087, %v2415
        %v2537 = vadd.f32 %v2088, %v2417
        %v2538 = vadd.f32 %v2089, %v2419
        %v2539 = vadd.f32 %v2090, %v2423
        %v2540 = vadd.f32 %v2091, %v2425
        %v2541 = vadd.f32 %v2092, %v2427
        %v2542 = vadd.f32 %v2093, %v2429
        %v2543 = vadd.f32 %v2094, %v2433
        %v2544 = vadd.f32 %v2095, %v2435
        %v2545 = vadd.f32 %v2096, %v2437
        %v2546 = vadd.f32 %v2097, %v2439
        %v2547 = vadd.f32 %v2098, %v2443
        %v2548 = vadd.f32 %v2099, %v2445
        %v2549 = vadd.f32 %v2100, %v2447
        %v2550 = vadd.f32 %v2101, %v2449
        %v2551 = vadd.f32 %v2102, %v2453
        %v2552 = vadd.f32 %v2103, %v2455
        %v2553 = vadd.f32 %v2104, %v2457
        %v2554 = vadd.f32 %v2105, %v2459
        %v2555 = vadd.f32 %v2106, %v2463
        %v2556 = vadd.f32 %v2107, %v2465
        %v2557 = vadd.f32 %v2108, %v2467
        %v2558 = vadd.f32 %v2109, %v2469
        %v2559 = vadd.f32 %v2110, %v2473
        %v2560 = vadd.f32 %v2111, %v2475
        %v2561 = vadd.f32 %v2112, %v2477
        %v2562 = vadd.f32 %v2113, %v2479
        %v2563 = vadd.f32 %v2114, %v2483
        %v2564 = vadd.f32 %v2115, %v2485
        %v2565 = vadd.f32 %v2116, %v2487
        %v2566 = vadd.f32 %v2117, %v2489
        %v2567 = vadd.f32 %v2118, %v2493
        %v2568 = vadd.f32 %v2119, %v2495
        %v2569 = vadd.f32 %v2120, %v2497
        %v2570 = vadd.f32 %v2121, %v2499
        %v2571 = vadd.f32 %v2122, %v2503
        %v2572 = vadd.f32 %v2123, %v2505
        %v2573 = vadd.f32 %v2124, %v2507
        %v2574 = vadd.f32 %v2125, %v2509
        %2575 = vst [vmem:[#allocation11] sm:$0xff] %v2511
        %2576 = vst [vmem:[#allocation11 + $0x8] sm:$0xff] %v2512
        %2577 = vst [vmem:[#allocation11 + $0x10] sm:$0xff] %v2513
        %2578 = vst [vmem:[#allocation11 + $0x18] sm:$0xff] %v2514
        %2579 = vst [vmem:[#allocation11 + $0x20] sm:$0xff] %v2515
        %2580 = vst [vmem:[#allocation11 + $0x28] sm:$0xff] %v2516
        %2581 = vst [vmem:[#allocation11 + $0x30] sm:$0xff] %v2517
        %2582 = vst [vmem:[#allocation11 + $0x38] sm:$0xff] %v2518
        %2583 = vst [vmem:[#allocation11 + $0x40] sm:$0xff] %v2519
        %2584 = vst [vmem:[#allocation11 + $0x48] sm:$0xff] %v2520
        %2585 = vst [vmem:[#allocation11 + $0x50] sm:$0xff] %v2521
        %2586 = vst [vmem:[#allocation11 + $0x58] sm:$0xff] %v2522
        %2587 = vst [vmem:[#allocation11 + $0x60] sm:$0xff] %v2523
        %2588 = vst [vmem:[#allocation11 + $0x68] sm:$0xff] %v2524
        %2589 = vst [vmem:[#allocation11 + $0x70] sm:$0xff] %v2525
        %2590 = vst [vmem:[#allocation11 + $0x78] sm:$0xff] %v2526
        %2591 = vst [vmem:[#allocation11 + $0x80] sm:$0xff] %v2527
        %2592 = vst [vmem:[#allocation11 + $0x88] sm:$0xff] %v2528
        %2593 = vst [vmem:[#allocation11 + $0x90] sm:$0xff] %v2529
        %2594 = vst [vmem:[#allocation11 + $0x98] sm:$0xff] %v2530
        %2595 = vst [vmem:[#allocation11 + $0xa0] sm:$0xff] %v2531
        %2596 = vst [vmem:[#allocation11 + $0xa8] sm:$0xff] %v2532
        %2597 = vst [vmem:[#allocation11 + $0xb0] sm:$0xff] %v2533
        %2598 = vst [vmem:[#allocation11 + $0xb8] sm:$0xff] %v2534
        %2599 = vst [vmem:[#allocation11 + $0xc0] sm:$0xff] %v2535
        %2600 = vst [vmem:[#allocation11 + $0xc8] sm:$0xff] %v2536
        %2601 = vst [vmem:[#allocation11 + $0xd0] sm:$0xff] %v2537
        %2602 = vst [vmem:[#allocation11 + $0xd8] sm:$0xff] %v2538
        %2603 = vst [vmem:[#allocation11 + $0xe0] sm:$0xff] %v2539
        %2604 = vst [vmem:[#allocation11 + $0xe8] sm:$0xff] %v2540
        %2605 = vst [vmem:[#allocation11 + $0xf0] sm:$0xff] %v2541
        %2606 = vst [vmem:[#allocation11 + $0xf8] sm:$0xff] %v2542
        %2607 = vst [vmem:[#allocation11 + $0x100] sm:$0xff] %v2543
        %2608 = vst [vmem:[#allocation11 + $0x108] sm:$0xff] %v2544
        %2609 = vst [vmem:[#allocation11 + $0x110] sm:$0xff] %v2545
        %2610 = vst [vmem:[#allocation11 + $0x118] sm:$0xff] %v2546
        %2611 = vst [vmem:[#allocation11 + $0x120] sm:$0xff] %v2547
        %2612 = vst [vmem:[#allocation11 + $0x128] sm:$0xff] %v2548
        %2613 = vst [vmem:[#allocation11 + $0x130] sm:$0xff] %v2549
        %2614 = vst [vmem:[#allocation11 + $0x138] sm:$0xff] %v2550
        %2615 = vst [vmem:[#allocation11 + $0x140] sm:$0xff] %v2551
        %2616 = vst [vmem:[#allocation11 + $0x148] sm:$0xff] %v2552
        %2617 = vst [vmem:[#allocation11 + $0x150] sm:$0xff] %v2553
        %2618 = vst [vmem:[#allocation11 + $0x158] sm:$0xff] %v2554
        %2619 = vst [vmem:[#allocation11 + $0x160] sm:$0xff] %v2555
        %2620 = vst [vmem:[#allocation11 + $0x168] sm:$0xff] %v2556
        %2621 = vst [vmem:[#allocation11 + $0x170] sm:$0xff] %v2557
        %2622 = vst [vmem:[#allocation11 + $0x178] sm:$0xff] %v2558
        %2623 = vst [vmem:[#allocation11 + $0x180] sm:$0xff] %v2559
        %2624 = vst [vmem:[#allocation11 + $0x188] sm:$0xff] %v2560
        %2625 = vst [vmem:[#allocation11 + $0x190] sm:$0xff] %v2561
        %2626 = vst [vmem:[#allocation11 + $0x198] sm:$0xff] %v2562
        %2627 = vst [vmem:[#allocation11 + $0x1a0] sm:$0xff] %v2563
        %2628 = vst [vmem:[#allocation11 + $0x1a8] sm:$0xff] %v2564
        %2629 = vst [vmem:[#allocation11 + $0x1b0] sm:$0xff] %v2565
        %2630 = vst [vmem:[#allocation11 + $0x1b8] sm:$0xff] %v2566
        %2631 = vst [vmem:[#allocation11 + $0x1c0] sm:$0xff] %v2567
        %2632 = vst [vmem:[#allocation11 + $0x1c8] sm:$0xff] %v2568
        %2633 = vst [vmem:[#allocation11 + $0x1d0] sm:$0xff] %v2569
        %2634 = vst [vmem:[#allocation11 + $0x1d8] sm:$0xff] %v2570
        %2635 = vst [vmem:[#allocation11 + $0x1e0] sm:$0xff] %v2571
        %2636 = vst [vmem:[#allocation11 + $0x1e8] sm:$0xff] %v2572
        %2637 = vst [vmem:[#allocation11 + $0x1f0] sm:$0xff] %v2573
        %2638 = vst [vmem:[#allocation11 + $0x1f8] sm:$0xff] %v2574
        %p2639 = scmp.eq.s32.totalorder %s31, 1
        // Predicated region
        $region73: #{tpu_custom_call.1} parent=47 // pred_check
          %p2640 = pneg %p2639
        $region74: #{tpu_custom_call.1} parent=47 // pred_check_branch
          %2642 = sbr.rel (%p2640) target = $region76
        $region75: #{tpu_custom_call.1} parent=47 // pred_region
          %v2643 = vld [vmem:[#allocation11] sm:$0xff]
          %v2644 = vld [vmem:[#allocation11 + $0x8] sm:$0xff]
          %v2645 = vld [vmem:[#allocation11 + $0x10] sm:$0xff]
          %v2646 = vld [vmem:[#allocation11 + $0x18] sm:$0xff]
          %v2647 = vld [vmem:[#allocation11 + $0x20] sm:$0xff]
          %v2648 = vld [vmem:[#allocation11 + $0x28] sm:$0xff]
          %v2649 = vld [vmem:[#allocation11 + $0x30] sm:$0xff]
          %v2650 = vld [vmem:[#allocation11 + $0x38] sm:$0xff]
          %v2651 = vld [vmem:[#allocation11 + $0x40] sm:$0xff]
          %v2652 = vld [vmem:[#allocation11 + $0x48] sm:$0xff]
          %v2653 = vld [vmem:[#allocation11 + $0x50] sm:$0xff]
          %v2654 = vld [vmem:[#allocation11 + $0x58] sm:$0xff]
          %v2655 = vld [vmem:[#allocation11 + $0x60] sm:$0xff]
          %v2656 = vld [vmem:[#allocation11 + $0x68] sm:$0xff]
          %v2657 = vld [vmem:[#allocation11 + $0x70] sm:$0xff]
          %v2658 = vld [vmem:[#allocation11 + $0x78] sm:$0xff]
          %v2659 = vld [vmem:[#allocation11 + $0x80] sm:$0xff]
          %v2660 = vld [vmem:[#allocation11 + $0x88] sm:$0xff]
          %v2661 = vld [vmem:[#allocation11 + $0x90] sm:$0xff]
          %v2662 = vld [vmem:[#allocation11 + $0x98] sm:$0xff]
          %v2663 = vld [vmem:[#allocation11 + $0xa0] sm:$0xff]
          %v2664 = vld [vmem:[#allocation11 + $0xa8] sm:$0xff]
          %v2665 = vld [vmem:[#allocation11 + $0xb0] sm:$0xff]
          %v2666 = vld [vmem:[#allocation11 + $0xb8] sm:$0xff]
          %v2667 = vld [vmem:[#allocation11 + $0xc0] sm:$0xff]
          %v2668 = vld [vmem:[#allocation11 + $0xc8] sm:$0xff]
          %v2669 = vld [vmem:[#allocation11 + $0xd0] sm:$0xff]
          %v2670 = vld [vmem:[#allocation11 + $0xd8] sm:$0xff]
          %v2671 = vld [vmem:[#allocation11 + $0xe0] sm:$0xff]
          %v2672 = vld [vmem:[#allocation11 + $0xe8] sm:$0xff]
          %v2673 = vld [vmem:[#allocation11 + $0xf0] sm:$0xff]
          %v2674 = vld [vmem:[#allocation11 + $0xf8] sm:$0xff]
          %v2675 = vld [vmem:[#allocation11 + $0x100] sm:$0xff]
          %v2676 = vld [vmem:[#allocation11 + $0x108] sm:$0xff]
          %v2677 = vld [vmem:[#allocation11 + $0x110] sm:$0xff]
          %v2678 = vld [vmem:[#allocation11 + $0x118] sm:$0xff]
          %v2679 = vld [vmem:[#allocation11 + $0x120] sm:$0xff]
          %v2680 = vld [vmem:[#allocation11 + $0x128] sm:$0xff]
          %v2681 = vld [vmem:[#allocation11 + $0x130] sm:$0xff]
          %v2682 = vld [vmem:[#allocation11 + $0x138] sm:$0xff]
          %v2683 = vld [vmem:[#allocation11 + $0x140] sm:$0xff]
          %v2684 = vld [vmem:[#allocation11 + $0x148] sm:$0xff]
          %v2685 = vld [vmem:[#allocation11 + $0x150] sm:$0xff]
          %v2686 = vld [vmem:[#allocation11 + $0x158] sm:$0xff]
          %v2687 = vld [vmem:[#allocation11 + $0x160] sm:$0xff]
          %v2688 = vld [vmem:[#allocation11 + $0x168] sm:$0xff]
          %v2689 = vld [vmem:[#allocation11 + $0x170] sm:$0xff]
          %v2690 = vld [vmem:[#allocation11 + $0x178] sm:$0xff]
          %v2691 = vld [vmem:[#allocation11 + $0x180] sm:$0xff]
          %v2692 = vld [vmem:[#allocation11 + $0x188] sm:$0xff]
          %v2693 = vld [vmem:[#allocation11 + $0x190] sm:$0xff]
          %v2694 = vld [vmem:[#allocation11 + $0x198] sm:$0xff]
          %v2695 = vld [vmem:[#allocation11 + $0x1a0] sm:$0xff]
          %v2696 = vld [vmem:[#allocation11 + $0x1a8] sm:$0xff]
          %v2697 = vld [vmem:[#allocation11 + $0x1b0] sm:$0xff]
          %v2698 = vld [vmem:[#allocation11 + $0x1b8] sm:$0xff]
          %v2699 = vld [vmem:[#allocation11 + $0x1c0] sm:$0xff]
          %v2700 = vld [vmem:[#allocation11 + $0x1c8] sm:$0xff]
          %v2701 = vld [vmem:[#allocation11 + $0x1d0] sm:$0xff]
          %v2702 = vld [vmem:[#allocation11 + $0x1d8] sm:$0xff]
          %v2703 = vld [vmem:[#allocation11 + $0x1e0] sm:$0xff]
          %v2704 = vld [vmem:[#allocation11 + $0x1e8] sm:$0xff]
          %v2705 = vld [vmem:[#allocation11 + $0x1f0] sm:$0xff]
          %v2706 = vld [vmem:[#allocation11 + $0x1f8] sm:$0xff]
          %v2707 = vld [vmem:[%s6] sm:$0x3]
          %v2709 = vlaneseq
          %v2710 = vshrl.u32 %v2709, 7
          %v2711 = vsub.s32 0, %v2710
          %v2712 = vrot.slane %v2707, %v2711
          %v2713 = vlaneseq
          %v2714 = vshrl.u32 %v2713, 7
          %v2715 = vsub.s32 1, %v2714
          %v2716 = vrot.slane %v2707, %v2715
          %v2719 = vadd.f32 %v2643, %v2712
          %v2720 = vadd.f32 %v2644, %v2716
          %v2721 = vadd.f32 %v2645, %v2712
          %v2722 = vadd.f32 %v2646, %v2716
          %v2723 = vadd.f32 %v2647, %v2712
          %v2724 = vadd.f32 %v2648, %v2716
          %v2725 = vadd.f32 %v2649, %v2712
          %v2726 = vadd.f32 %v2650, %v2716
          %v2727 = vadd.f32 %v2651, %v2712
          %v2728 = vadd.f32 %v2652, %v2716
          %v2729 = vadd.f32 %v2653, %v2712
          %v2730 = vadd.f32 %v2654, %v2716
          %v2731 = vadd.f32 %v2655, %v2712
          %v2732 = vadd.f32 %v2656, %v2716
          %v2733 = vadd.f32 %v2657, %v2712
          %v2734 = vadd.f32 %v2658, %v2716
          %v2735 = vadd.f32 %v2659, %v2712
          %v2736 = vadd.f32 %v2660, %v2716
          %v2737 = vadd.f32 %v2661, %v2712
          %v2738 = vadd.f32 %v2662, %v2716
          %v2739 = vadd.f32 %v2663, %v2712
          %v2740 = vadd.f32 %v2664, %v2716
          %v2741 = vadd.f32 %v2665, %v2712
          %v2742 = vadd.f32 %v2666, %v2716
          %v2743 = vadd.f32 %v2667, %v2712
          %v2744 = vadd.f32 %v2668, %v2716
          %v2745 = vadd.f32 %v2669, %v2712
          %v2746 = vadd.f32 %v2670, %v2716
          %v2747 = vadd.f32 %v2671, %v2712
          %v2748 = vadd.f32 %v2672, %v2716
          %v2749 = vadd.f32 %v2673, %v2712
          %v2750 = vadd.f32 %v2674, %v2716
          %v2751 = vadd.f32 %v2675, %v2712
          %v2752 = vadd.f32 %v2676, %v2716
          %v2753 = vadd.f32 %v2677, %v2712
          %v2754 = vadd.f32 %v2678, %v2716
          %v2755 = vadd.f32 %v2679, %v2712
          %v2756 = vadd.f32 %v2680, %v2716
          %v2757 = vadd.f32 %v2681, %v2712
          %v2758 = vadd.f32 %v2682, %v2716
          %v2759 = vadd.f32 %v2683, %v2712
          %v2760 = vadd.f32 %v2684, %v2716
          %v2761 = vadd.f32 %v2685, %v2712
          %v2762 = vadd.f32 %v2686, %v2716
          %v2763 = vadd.f32 %v2687, %v2712
          %v2764 = vadd.f32 %v2688, %v2716
          %v2765 = vadd.f32 %v2689, %v2712
          %v2766 = vadd.f32 %v2690, %v2716
          %v2767 = vadd.f32 %v2691, %v2712
          %v2768 = vadd.f32 %v2692, %v2716
          %v2769 = vadd.f32 %v2693, %v2712
          %v2770 = vadd.f32 %v2694, %v2716
          %v2771 = vadd.f32 %v2695, %v2712
          %v2772 = vadd.f32 %v2696, %v2716
          %v2773 = vadd.f32 %v2697, %v2712
          %v2774 = vadd.f32 %v2698, %v2716
          %v2775 = vadd.f32 %v2699, %v2712
          %v2776 = vadd.f32 %v2700, %v2716
          %v2777 = vadd.f32 %v2701, %v2712
          %v2778 = vadd.f32 %v2702, %v2716
          %v2779 = vadd.f32 %v2703, %v2712
          %v2780 = vadd.f32 %v2704, %v2716
          %v2781 = vadd.f32 %v2705, %v2712
          %v2782 = vadd.f32 %v2706, %v2716
          %2783 = vst [vmem:[#allocation11] sm:$0xff] %v2719
          %2784 = vst [vmem:[#allocation11 + $0x8] sm:$0xff] %v2720
          %2785 = vst [vmem:[#allocation11 + $0x10] sm:$0xff] %v2721
          %2786 = vst [vmem:[#allocation11 + $0x18] sm:$0xff] %v2722
          %2787 = vst [vmem:[#allocation11 + $0x20] sm:$0xff] %v2723
          %2788 = vst [vmem:[#allocation11 + $0x28] sm:$0xff] %v2724
          %2789 = vst [vmem:[#allocation11 + $0x30] sm:$0xff] %v2725
          %2790 = vst [vmem:[#allocation11 + $0x38] sm:$0xff] %v2726
          %2791 = vst [vmem:[#allocation11 + $0x40] sm:$0xff] %v2727
          %2792 = vst [vmem:[#allocation11 + $0x48] sm:$0xff] %v2728
          %2793 = vst [vmem:[#allocation11 + $0x50] sm:$0xff] %v2729
          %2794 = vst [vmem:[#allocation11 + $0x58] sm:$0xff] %v2730
          %2795 = vst [vmem:[#allocation11 + $0x60] sm:$0xff] %v2731
          %2796 = vst [vmem:[#allocation11 + $0x68] sm:$0xff] %v2732
          %2797 = vst [vmem:[#allocation11 + $0x70] sm:$0xff] %v2733
          %2798 = vst [vmem:[#allocation11 + $0x78] sm:$0xff] %v2734
          %2799 = vst [vmem:[#allocation11 + $0x80] sm:$0xff] %v2735
          %2800 = vst [vmem:[#allocation11 + $0x88] sm:$0xff] %v2736
          %2801 = vst [vmem:[#allocation11 + $0x90] sm:$0xff] %v2737
          %2802 = vst [vmem:[#allocation11 + $0x98] sm:$0xff] %v2738
          %2803 = vst [vmem:[#allocation11 + $0xa0] sm:$0xff] %v2739
          %2804 = vst [vmem:[#allocation11 + $0xa8] sm:$0xff] %v2740
          %2805 = vst [vmem:[#allocation11 + $0xb0] sm:$0xff] %v2741
          %2806 = vst [vmem:[#allocation11 + $0xb8] sm:$0xff] %v2742
          %2807 = vst [vmem:[#allocation11 + $0xc0] sm:$0xff] %v2743
          %2808 = vst [vmem:[#allocation11 + $0xc8] sm:$0xff] %v2744
          %2809 = vst [vmem:[#allocation11 + $0xd0] sm:$0xff] %v2745
          %2810 = vst [vmem:[#allocation11 + $0xd8] sm:$0xff] %v2746
          %2811 = vst [vmem:[#allocation11 + $0xe0] sm:$0xff] %v2747
          %2812 = vst [vmem:[#allocation11 + $0xe8] sm:$0xff] %v2748
          %2813 = vst [vmem:[#allocation11 + $0xf0] sm:$0xff] %v2749
          %2814 = vst [vmem:[#allocation11 + $0xf8] sm:$0xff] %v2750
          %2815 = vst [vmem:[#allocation11 + $0x100] sm:$0xff] %v2751
          %2816 = vst [vmem:[#allocation11 + $0x108] sm:$0xff] %v2752
          %2817 = vst [vmem:[#allocation11 + $0x110] sm:$0xff] %v2753
          %2818 = vst [vmem:[#allocation11 + $0x118] sm:$0xff] %v2754
          %2819 = vst [vmem:[#allocation11 + $0x120] sm:$0xff] %v2755
          %2820 = vst [vmem:[#allocation11 + $0x128] sm:$0xff] %v2756
          %2821 = vst [vmem:[#allocation11 + $0x130] sm:$0xff] %v2757
          %2822 = vst [vmem:[#allocation11 + $0x138] sm:$0xff] %v2758
          %2823 = vst [vmem:[#allocation11 + $0x140] sm:$0xff] %v2759
          %2824 = vst [vmem:[#allocation11 + $0x148] sm:$0xff] %v2760
          %2825 = vst [vmem:[#allocation11 + $0x150] sm:$0xff] %v2761
          %2826 = vst [vmem:[#allocation11 + $0x158] sm:$0xff] %v2762
          %2827 = vst [vmem:[#allocation11 + $0x160] sm:$0xff] %v2763
          %2828 = vst [vmem:[#allocation11 + $0x168] sm:$0xff] %v2764
          %2829 = vst [vmem:[#allocation11 + $0x170] sm:$0xff] %v2765
          %2830 = vst [vmem:[#allocation11 + $0x178] sm:$0xff] %v2766
          %2831 = vst [vmem:[#allocation11 + $0x180] sm:$0xff] %v2767
          %2832 = vst [vmem:[#allocation11 + $0x188] sm:$0xff] %v2768
          %2833 = vst [vmem:[#allocation11 + $0x190] sm:$0xff] %v2769
          %2834 = vst [vmem:[#allocation11 + $0x198] sm:$0xff] %v2770
          %2835 = vst [vmem:[#allocation11 + $0x1a0] sm:$0xff] %v2771
          %2836 = vst [vmem:[#allocation11 + $0x1a8] sm:$0xff] %v2772
          %2837 = vst [vmem:[#allocation11 + $0x1b0] sm:$0xff] %v2773
          %2838 = vst [vmem:[#allocation11 + $0x1b8] sm:$0xff] %v2774
          %2839 = vst [vmem:[#allocation11 + $0x1c0] sm:$0xff] %v2775
          %2840 = vst [vmem:[#allocation11 + $0x1c8] sm:$0xff] %v2776
          %2841 = vst [vmem:[#allocation11 + $0x1d0] sm:$0xff] %v2777
          %2842 = vst [vmem:[#allocation11 + $0x1d8] sm:$0xff] %v2778
          %2843 = vst [vmem:[#allocation11 + $0x1e0] sm:$0xff] %v2779
          %2844 = vst [vmem:[#allocation11 + $0x1e8] sm:$0xff] %v2780
          %2845 = vst [vmem:[#allocation11 + $0x1f0] sm:$0xff] %v2781
          %2846 = vst [vmem:[#allocation11 + $0x1f8] sm:$0xff] %v2782
        $region76: #{tpu_custom_call.1} parent=47 // pred_fallthru
          _
        // Predicated region
        $region77: #{tpu_custom_call.1} parent=47 // pred_check
          %p2847 = pneg %p233
        $region78: #{tpu_custom_call.1} parent=47 // pred_check_branch
          %2849 = sbr.rel (%p2847) target = $region80
        $region79: #{tpu_custom_call.1} parent=47 // pred_region
          %s2850 = smul.u32 32, %s30
          %s2852 = ssub.s32 8192, 8192
          %2853 = vsyncadd [#allocation4], %s2852
          %s2854 = smul.addr %s2850, 2
          %s2855 = smul.addr %s2854, 128
          %s2856 = scalar_lea.hbm %s7, %s2855
          %s2857 = sshll.u32 [#allocation11], 4
          %s2858 = int_to_ptr.vmem [resolvable:$true] %s2857
          %2863 = dma.vmem_to_hbm [thread:$0]  %s2858, 8192, %s2856, [#allocation4], 256, 256, 16
        $region80: #{tpu_custom_call.1} parent=47 // pred_fallthru
          _
        // Predicated region
        $region81: #{tpu_custom_call.1} parent=47 // pred_check
          %p2864 = pneg %p233
        $region82: #{tpu_custom_call.1} parent=47 // pred_check_branch
          %2866 = sbr.rel (%p2864) target = $region84
        $region83: #{tpu_custom_call.1} parent=47 // pred_region
          %2867 = dma.done [#allocation4], 8192
        $region84: #{tpu_custom_call.1} parent=47 // pred_fallthru
          _
      $region48: #{tpu_custom_call.1} parent=5 // pred_fallthru
        _
      %p2868 = scmp.le.s32.totalorder 2, %s21
      // Predicated region
      $region85: #{tpu_custom_call.1} parent=5 // pred_check
        %p2869 = pneg %p2868
      $region86: #{tpu_custom_call.1} parent=5 // pred_check_branch
        %2871 = sbr.rel (%p2869) target = $region88
      $region87: #{tpu_custom_call.1} parent=5 // pred_region
        %s2872 = ssub.s32 %s21, 2
      $region88: #{tpu_custom_call.1} parent=5 // pred_fallthru
        _
    $region6: #{tpu_custom_call.1} parent=1 // loop_footer
      %s25 = sadd.s32 1, %s21
    $region7: #{tpu_custom_call.1} parent=1 // loop_footer_branch
      %20 = sbr.rel target = $region3
    $region8: #{tpu_custom_call.1} parent=1 // loop_exit
      _
    %2873 = vsyncpa [#allocation3], 1
    %s2874 = scalar_lea.sflag [#allocation3], 1
    %2875 = vsyncpa %s2874, 1
    %2876 = vsyncpa [#allocation6], 1
    %s2877 = scalar_lea.sflag [#allocation6], 1
    %2878 = vsyncpa %s2877, 1
    %2879 = vsyncpa [#allocation9], 1
    %s2880 = scalar_lea.sflag [#allocation9], 1
    %2881 = vsyncpa %s2880, 1
    %2882 = vsyncpa [#allocation4], 1
    %s2883 = scalar_lea.sflag [#allocation4], 1
    %2884 = vsyncpa %s2883, 1

</llo_original>
